<compile_context>
chip_gen: v6e
topology: v6e:2x2x1
jax: 0.10.0
libtpu: 0.0.40
codegen_flags: <defaults>
</compile_context>

<pallas_src>
import functools

import jax
import jax.numpy as jnp
from jax.experimental import pallas as pl
from jax.experimental.pallas import tpu as pltpu

_SQRT2_INV = 0.7071067811865476
_MiB = 1024 * 1024


def _gelu_exact(x):
    # Matches PyTorch nn.GELU() default (erf-based, exact).
    return 0.5 * x * (1.0 + jax.lax.erf(x * _SQRT2_INV))


def _excite(pooled, w1, w2, use_mxu):
    # pooled: (Bt, C); w1: (Cr, C); w2: (C, Cr)   [PyTorch Linear layout]
    if use_mxu:
        # Large channel counts: land on the (otherwise idle) MXU instead of
        # materializing a (Bt, Cr, C) f32 temporary on the VPU.
        h = _gelu_exact(jnp.dot(pooled, w1.T, preferred_element_type=jnp.float32))
        z = jnp.dot(h, w2.T, preferred_element_type=jnp.float32)
    else:
        h = _gelu_exact(jnp.sum(pooled[:, None, :] * w1[None, :, :], axis=2))
        z = jnp.sum(h[:, None, :] * w2[None, :, :], axis=2)
    return jax.nn.sigmoid(z)


# ----------------------------------------------------------------------------
# Fused single-pass kernel (one HBM read + one HBM write of x).
# ----------------------------------------------------------------------------
def _se_fused_kernel(x_ref, w1_ref, w2_ref, o_ref, *, inv_spatial, s,
                     needs_mask, use_mxu):
    # x_ref / o_ref: (Bt, C, S) -- channels on sublanes, flattened spatial on lanes.
    x = x_ref[...]                                             # (Bt, C, S)
    if needs_mask:
        # Full-extent last-dim block: VMEM pad lanes beyond s are undefined and
        # MUST be masked before the reduction or the mean is biased.
        lane = jax.lax.broadcasted_iota(jnp.int32, x.shape, 2)
        x = jnp.where(lane < s, x, 0.0)

    # Squeeze: divide by the TRUE spatial count.
    pooled = jnp.sum(x, axis=2) * inv_spatial                  # (Bt, C)

    # Excitation (tiny).
    scale = _excite(pooled, w1_ref[...], w2_ref[...], use_mxu)  # (Bt, C)

    # Rescale: explicit second VMEM read of x so the large tile is not kept
    # live across the FC path (avoids vreg spill/refill on big tiles).  The
    # re-read costs vld slots only and stays hidden under the HBM DMA.
    o_ref[...] = x_ref[...] * scale[:, :, None]


# ----------------------------------------------------------------------------
# Two-pass spatial-chunked fallback (for tiles too large for VMEM).
# ----------------------------------------------------------------------------
def _pool_kernel(x_ref, pooled_ref, *, inv_spatial, s, chunk):
    j = pl.program_id(1)
    x = x_ref[...]                                             # (1, C, chunk)
    lane = jax.lax.broadcasted_iota(jnp.int32, x.shape, 2) + j * chunk
    x = jnp.where(lane < s, x, 0.0)
    part = (jnp.sum(x, axis=2) * inv_spatial)[:, None, :]      # (1, 1, C)

    @pl.when(j == 0)
    def _():
        pooled_ref[...] = jnp.zeros_like(pooled_ref)

    pooled_ref[...] += part


def _rescale_kernel(pooled_ref, w1_ref, w2_ref, x_ref, o_ref, *, use_mxu):
    # Recompute the tiny excitation per chunk (a few hundred FLOPs) so there is
    # no scratch carried across the chunk axis -> both grid axes stay parallel.
    pooled = pooled_ref[...][:, 0, :]                          # (1, C)
    scale = _excite(pooled, w1_ref[...], w2_ref[...], use_mxu)  # (1, C)
    o_ref[...] = x_ref[...] * scale[:, :, None]


# ----------------------------------------------------------------------------
# Wrappers / tiling heuristics.
# ----------------------------------------------------------------------------
def _vmem_params():
    """Generation-aware (budget, scoped-limit ceiling, multi-TC?) in bytes."""
    try:
        cap = int(pltpu.get_tpu_info().vmem_capacity_bytes)
    except Exception:
        cap = 64 * _MiB  # conservative (v7x per-TC) if the query is unavailable
    if cap <= 64 * _MiB:
        # v7x-class: 64 MiB per TensorCore, 2 TensorCores per chip.
        budget = int(0.70 * cap)        # ~44 MiB for tile picking
        ceiling = cap - 8 * _MiB        # ~56 MiB scoped limit (Mosaic headroom)
        multi_core = True
    else:
        # v5e / v6e: 128 MiB VMEM, single TensorCore -> go big.
        budget = int(0.75 * cap)        # ~96 MiB
        ceiling = cap - 16 * _MiB       # ~112 MiB
        multi_core = False
    return budget, ceiling, multi_core


def _pick_batch_tile(b, bytes_per_batch, budget, multi_core):
    # ~4x per in-flight batch element: double-buffered input + output blocks.
    max_bt = max(1, budget // (4 * bytes_per_batch))
    if multi_core and b >= 2:
        # Keep >= 2 grid steps so both v7x TensorCores get work.
        max_bt = min(max_bt, max(1, b // 2))
    bt = 1
    for cand in range(1, b + 1):
        if b % cand == 0 and cand <= max_bt:
            bt = cand
    return bt


def _se_fused(x2, fc1_w, fc2_w, s, bytes_per_batch, budget, ceiling,
              multi_core, use_mxu):
    b, c, _ = x2.shape
    cr = fc1_w.shape[0]
    bt = _pick_batch_tile(b, bytes_per_batch, budget, multi_core)
    grid = b // bt

    need = 4 * bt * bytes_per_batch + 4 * (c * cr * 4) + 1 * _MiB
    vmem_limit = int(max(32 * _MiB, min(ceiling, need)))

    kernel = functools.partial(
        _se_fused_kernel, inv_spatial=1.0 / float(s), s=s,
        needs_mask=(s % 128 != 0), use_mxu=use_mxu)

    return pl.pallas_call(
        kernel,
        out_shape=jax.ShapeDtypeStruct((b, c, s), x2.dtype),
        grid_spec=pltpu.PrefetchScalarGridSpec(
            num_scalar_prefetch=0,
            grid=(grid,),
            in_specs=[
                pl.BlockSpec((bt, c, s), lambda i: (i, 0, 0)),
                pl.BlockSpec((cr, c), lambda i: (0, 0)),
                pl.BlockSpec((c, cr), lambda i: (0, 0)),
            ],
            out_specs=pl.BlockSpec((bt, c, s), lambda i: (i, 0, 0)),
        ),
        compiler_params=pltpu.CompilerParams(
            dimension_semantics=("parallel",),
            vmem_limit_bytes=vmem_limit,
        ),
        cost_estimate=pl.CostEstimate(
            flops=2 * b * c * s + 4 * b * c * cr,      # pooled adds + rescale muls + FC
            transcendentals=b * (c + cr),
            bytes_accessed=2 * b * c * s * 4 + 2 * c * cr * 4,
        ),
    )(x2, fc1_w, fc2_w)


def _se_chunked(x2, fc1_w, fc2_w, s, budget, ceiling, use_mxu, force_chunk):
    b, c, _ = x2.shape
    cr = fc1_w.shape[0]
    if force_chunk is not None:
        chunk = int(force_chunk)
    else:
        # Rescale pass holds double-buffered (1, C, chunk) input AND output blocks.
        chunk = max(128, (budget // (16 * c)) // 128 * 128)
    chunk = min(chunk, ((s + 127) // 128) * 128)
    n_chunks = pl.cdiv(s, chunk)

    need = 4 * c * chunk * 4 + 4 * (c * cr * 4) + 8 * c * 4 + 1 * _MiB
    vmem_limit = int(max(32 * _MiB, min(ceiling, need)))

    # Pass 1: pooled mean, accumulated across the (arbitrary) chunk axis.
    pooled = pl.pallas_call(
        functools.partial(_pool_kernel, inv_spatial=1.0 / float(s), s=s,
                          chunk=chunk),
        out_shape=jax.ShapeDtypeStruct((b, 1, c), jnp.float32),
        grid_spec=pltpu.PrefetchScalarGridSpec(
            num_scalar_prefetch=0,
            grid=(b, n_chunks),
            in_specs=[pl.BlockSpec((1, c, chunk), lambda i, j: (i, 0, j))],
            out_specs=pl.BlockSpec((1, 1, c), lambda i, j: (i, 0, 0)),
        ),
        compiler_params=pltpu.CompilerParams(
            dimension_semantics=("parallel", "arbitrary"),
            vmem_limit_bytes=vmem_limit,
        ),
        cost_estimate=pl.CostEstimate(
            flops=b * c * s,
            transcendentals=0,
            bytes_accessed=b * c * s * 4 + b * c * 4,
        ),
    )(x2)

    # Pass 2: re-read chunks, recompute the tiny scale per chunk, rescale.
    out2 = pl.pallas_call(
        functools.partial(_rescale_kernel, use_mxu=use_mxu),
        out_shape=jax.ShapeDtypeStruct((b, c, s), x2.dtype),
        grid_spec=pltpu.PrefetchScalarGridSpec(
            num_scalar_prefetch=0,
            grid=(b, n_chunks),
            in_specs=[
                pl.BlockSpec((1, 1, c), lambda i, j: (i, 0, 0)),
                pl.BlockSpec((cr, c), lambda i, j: (0, 0)),
                pl.BlockSpec((c, cr), lambda i, j: (0, 0)),
                pl.BlockSpec((1, c, chunk), lambda i, j: (i, 0, j)),
            ],
            out_specs=pl.BlockSpec((1, c, chunk), lambda i, j: (i, 0, j)),
        ),
        compiler_params=pltpu.CompilerParams(
            dimension_semantics=("parallel", "parallel"),
            vmem_limit_bytes=vmem_limit,
        ),
        cost_estimate=pl.CostEstimate(
            flops=b * c * s + 4 * b * c * cr * n_chunks,
            transcendentals=b * n_chunks * (c + cr),
            bytes_accessed=2 * b * c * s * 4 + 2 * c * cr * 4,
        ),
    )(pooled, fc1_w, fc2_w, x2)
    return out2


def se_block(x, fc1_w, fc2_w, *, force_spatial_chunking=False, force_chunk=None):
    """x: (b, c, d, h, w) f32; fc1_w: (c//r, c); fc2_w: (c, c//r)."""
    b, c, d, h, w = x.shape
    s = d * h * w
    cr = fc1_w.shape[0]

    # Free metadata reshape (no HBM pass); no padding / slicing of x in XLA.
    x2 = x.reshape(b, c, s)
    s_lanes = ((s + 127) // 128) * 128        # VMEM lane footprint of a full-s block
    bytes_per_batch = c * s_lanes * 4

    budget, ceiling, multi_core = _vmem_params()
    use_mxu = (c >= 512) or (cr >= 64)

    fits_fused = (4 * bytes_per_batch + 4 * (c * cr * 4) + 2 * _MiB) <= budget
    if force_spatial_chunking or not fits_fused:
        out2 = _se_chunked(x2, fc1_w, fc2_w, s, budget, ceiling, use_mxu,
                           force_chunk)
    else:
        out2 = _se_fused(x2, fc1_w, fc2_w, s, bytes_per_batch, budget, ceiling,
                         multi_core, use_mxu)
    return out2.reshape(b, c, d, h, w)


def se_block_ref(x, fc1_w, fc2_w):
    # Pure-JAX reference mirroring the PyTorch module.
    b, c = x.shape[0], x.shape[1]
    y = jnp.mean(x, axis=(2, 3, 4))                      # (b, c)
    y = _gelu_exact(y @ fc1_w.T)                         # (b, c//r)
    y = jax.nn.sigmoid(y @ fc2_w.T)                      # (b, c)
    return x * y.reshape(b, c, 1, 1, 1)


if __name__ == "__main__":
    def run_case(b, c, red, d, h, w, **kw):
        key = jax.random.PRNGKey(0)
        kx, k1, k2 = jax.random.split(key, 3)
        cr = max(1, c // red)
        x = jax.random.normal(kx, (b, c, d, h, w), dtype=jnp.float32)
        # PyTorch Linear layout: (out_features, in_features), bias=False.
        fc1_w = 0.1 * jax.random.normal(k1, (cr, c), dtype=jnp.float32)
        fc2_w = 0.1 * jax.random.normal(k2, (c, cr), dtype=jnp.float32)

        out = jax.block_until_ready(se_block(x, fc1_w, fc2_w, **kw))
        ref = se_block_ref(x, fc1_w, fc2_w)
        assert out.shape == x.shape and out.dtype == x.dtype
        assert jnp.allclose(out, ref, atol=1e-5, rtol=1e-5), "mismatch vs reference"

    # Fused path, lane-aligned spatial (S = 128).
    run_case(2, 64, 16, 4, 8, 4)
    # Fused path, unaligned spatial (S = 105): full-extent last-dim block + lane mask.
    run_case(2, 64, 16, 3, 5, 7)
    # Two-pass spatial-chunked fallback (forced): S = 352 in 128-lane chunks (last partial).
    run_case(2, 32, 16, 4, 8, 11, force_spatial_chunking=True, force_chunk=128)

    print("KERNEL_OK")
</pallas_src>

<mosaic_0001>
module attributes {stable_mosaic.version = 11 : i64} {
  func.func @_se_fused_kernel(%arg0: i32, %arg1: memref<1x64x128xf32, #tpu.memory_space<vmem>>, %arg2: memref<4x64xf32, #tpu.memory_space<vmem>>, %arg3: memref<64x4xf32, #tpu.memory_space<vmem>>, %arg4: memref<1x64x128xf32, #tpu.memory_space<vmem>>) attributes {dimension_semantics = [#tpu.dimension_semantics<parallel>], iteration_bounds = array<i64: 2>, scalar_prefetch = 0 : i64, scratch_operands = 0 : i64, tpu.core_type = #tpu.core_type<tc>, window_params = [{transform_indices = @transform_0, window_bounds = array<i64: 1, 64, 128>}, {pipeline_mode = #tpu.pipeline_mode<synchronous>, transform_indices = @transform_1, window_bounds = array<i64: 4, 64>}, {pipeline_mode = #tpu.pipeline_mode<synchronous>, transform_indices = @transform_2, window_bounds = array<i64: 64, 4>}, {transform_indices = @transform_3, window_bounds = array<i64: 1, 64, 128>}]} {
    %c0 = arith.constant 0 : index
    %c0_0 = arith.constant 0 : index
    %c0_1 = arith.constant 0 : index
    %0 = vector.load %arg1[%c0, %c0_0, %c0_1] : memref<1x64x128xf32, #tpu.memory_space<vmem>>, vector<1x64x128xf32>
    %cst = arith.constant dense<0.000000e+00> : vector<1x64xf32>
    %1 = vector.multi_reduction <add>, %0, %cst [2] : vector<1x64x128xf32> to vector<1x64xf32>
    %cst_2 = arith.constant 7.812500e-03 : f32
    %2 = vector.broadcast %cst_2 : f32 to vector<1x64xf32>
    %3 = arith.mulf %1, %2 : vector<1x64xf32>
    %c0_3 = arith.constant 0 : index
    %c0_4 = arith.constant 0 : index
    %4 = vector.load %arg2[%c0_3, %c0_4] : memref<4x64xf32, #tpu.memory_space<vmem>>, vector<4x64xf32>
    %c0_5 = arith.constant 0 : index
    %c0_6 = arith.constant 0 : index
    %5 = vector.load %arg3[%c0_5, %c0_6] : memref<64x4xf32, #tpu.memory_space<vmem>>, vector<64x4xf32>
    %6 = vector.shape_cast %3 : vector<1x64xf32> to vector<1x1x64xf32>
    %7 = vector.shape_cast %4 : vector<4x64xf32> to vector<1x4x64xf32>
    %8 = vector.broadcast %6 : vector<1x1x64xf32> to vector<1x4x64xf32>
    %9 = arith.mulf %8, %7 : vector<1x4x64xf32>
    %cst_7 = arith.constant dense<0.000000e+00> : vector<1x4xf32>
    %10 = vector.multi_reduction <add>, %9, %cst_7 [2] : vector<1x4x64xf32> to vector<1x4xf32>
    %cst_8 = arith.constant 5.000000e-01 : f32
    %11 = vector.broadcast %cst_8 : f32 to vector<1x4xf32>
    %12 = arith.mulf %11, %10 : vector<1x4xf32>
    %cst_9 = arith.constant 0.707106769 : f32
    %13 = vector.broadcast %cst_9 : f32 to vector<1x4xf32>
    %14 = arith.mulf %10, %13 : vector<1x4xf32>
    %15 = math.erf %14 : vector<1x4xf32>
    %cst_10 = arith.constant 1.000000e+00 : f32
    %16 = vector.broadcast %cst_10 : f32 to vector<1x4xf32>
    %17 = arith.addf %16, %15 : vector<1x4xf32>
    %18 = arith.mulf %12, %17 : vector<1x4xf32>
    %19 = vector.shape_cast %18 : vector<1x4xf32> to vector<1x1x4xf32>
    %20 = vector.shape_cast %5 : vector<64x4xf32> to vector<1x64x4xf32>
    %21 = vector.broadcast %19 : vector<1x1x4xf32> to vector<1x64x4xf32>
    %22 = arith.mulf %21, %20 : vector<1x64x4xf32>
    %cst_11 = arith.constant dense<0.000000e+00> : vector<1x64xf32>
    %23 = vector.multi_reduction <add>, %22, %cst_11 [2] : vector<1x64x4xf32> to vector<1x64xf32>
    %24 = arith.negf %23 : vector<1x64xf32>
    %25 = math.exp %24 : vector<1x64xf32>
    %cst_12 = arith.constant 1.000000e+00 : f32
    %26 = vector.broadcast %cst_12 : f32 to vector<1x64xf32>
    %27 = arith.addf %26, %25 : vector<1x64xf32>
    %28 = arith.divf %26, %27 : vector<1x64xf32>
    %c0_13 = arith.constant 0 : index
    %c0_14 = arith.constant 0 : index
    %c0_15 = arith.constant 0 : index
    %29 = vector.load %arg1[%c0_13, %c0_14, %c0_15] : memref<1x64x128xf32, #tpu.memory_space<vmem>>, vector<1x64x128xf32>
    %30 = vector.shape_cast %28 : vector<1x64xf32> to vector<1x64x1xf32>
    %31 = vector.broadcast %30 : vector<1x64x1xf32> to vector<1x64x128xf32>
    %32 = arith.mulf %29, %31 : vector<1x64x128xf32>
    %c0_16 = arith.constant 0 : index
    %c0_17 = arith.constant 0 : index
    %c0_18 = arith.constant 0 : index
    %33 = vector.load %arg4[%c0_16, %c0_17, %c0_18] : memref<1x64x128xf32, #tpu.memory_space<vmem>>, vector<1x64x128xf32>
    tpu.vector_store %arg4[%c0_16, %c0_17, %c0_18], %32 {strides = array<i32>} : memref<1x64x128xf32, #tpu.memory_space<vmem>>, vector<1x64x128xf32>,
    return
  }
  func.func @transform_0(%arg0: i32) -> (i32, i32, i32) {
    %c0_i32 = arith.constant 0 : i32
    %c0_i32_0 = arith.constant 0 : i32
    %c0_i32_1 = arith.constant 0 : i32
    return %arg0, %c0_i32, %c0_i32_0 : i32, i32, i32
  }
  func.func @transform_1(%arg0: i32) -> (i32, i32) {
    %c0_i32 = arith.constant 0 : i32
    %c0_i32_0 = arith.constant 0 : i32
    %c0_i32_1 = arith.constant 0 : i32
    return %c0_i32, %c0_i32_0 : i32, i32
  }
  func.func @transform_2(%arg0: i32) -> (i32, i32) {
    %c0_i32 = arith.constant 0 : i32
    %c0_i32_0 = arith.constant 0 : i32
    %c0_i32_1 = arith.constant 0 : i32
    return %c0_i32, %c0_i32_0 : i32, i32
  }
  func.func @transform_3(%arg0: i32) -> (i32, i32, i32) {
    %c0_i32 = arith.constant 0 : i32
    %c0_i32_0 = arith.constant 0 : i32
    %c0_i32_1 = arith.constant 0 : i32
    return %arg0, %c0_i32, %c0_i32_0 : i32, i32, i32
  }
}

</mosaic_0001>

<llo_original>
// kernel: tpu_custom_call.1
$region0: #{tpu_custom_call.1}
  #allocation0 [shape = 'u32[]', space=smem, size = 0x4, offset = 0x4, fixed_abs, tag = 'smem constant byte address 0x4 - core index']
  #allocation1 [shape = 'u32[144,128]{1,0:T(1,128)}', space=vmem, size = 0x12000, scoped, tag = 'internal scratch']
  %s0 = inlined_call_operand.hbm [shape: f32[2,64,128], index: 0, kind: input, shape index: {}]
  %s1 = inlined_call_operand.vmem [shape: f32[4,64], index: 1, kind: input, shape index: {}]
  %s2 = inlined_call_operand.vmem [shape: f32[64,4], index: 2, kind: input, shape index: {}]
  %s3 = inlined_call_operand.hbm [shape: f32[2,64,128], index: 3, kind: output, shape index: {}]
  %s4 = sld [smem:[#allocation0]]
  $region49: #{tpu_custom_call.1} parent=0
    _
  %s6 = ssub.s32 1, %s4
  %s7 = scalar_select 0, %s6, %s4
  $region1: #{tpu_custom_call.1} parent=0
    #allocation2 [shape = 'u8[65536]{0}', space=vmem, size = 0x10000, scoped, tag = 'input window, operand 0']
    #allocation3 [shape = 's32[2]{0}', space=sflag, size = 0x8, scoped, tag = 'scoped memory for tpu_custom_call.1']
    #allocation4 [shape = 's32[2]{0}', space=sflag, size = 0x8, scoped, tag = 'scoped memory for tpu_custom_call.1']
    #allocation5 [shape = 'u8[65536]{0}', space=vmem, size = 0x10000, scoped, tag = 'output window, operand 0']
    %8 = vsyncpa [#allocation3], 0
    %s9 = scalar_lea.sflag [#allocation3], 1
    %10 = vsyncpa %s9, 0
    %11 = vsyncpa [#allocation4], 0
    %s12 = scalar_lea.sflag [#allocation4], 1
    %13 = vsyncpa %s12, 0
    loop: start=0, step=1, limit=4
    $region2: #{tpu_custom_call.1} parent=1 // loop_pre_header
      _
    $region3: #{tpu_custom_call.1} parent=1 // loop_header
      %s15 = sphi 0, %s19
      %p16 = scmp.ge.s32.totalorder %s15, 4
      %s25 = sphi 0, %s27
      %s28 = sphi 0, %s25
      %s29 = sphi 0, %s28
      %s45 = sphi 0, %s29
      %s49 = sphi 0, %s49
      %s51 = sphi 0, %s49
      %s52 = sphi 0, %s51
      %s66 = sphi 0, %s52
      %s70 = sphi 0, %s70
      %s72 = sphi 0, %s70
      %s73 = sphi 0, %s72
      %s87 = sphi 0, %s73
      %s93 = sphi 0, %s95
      %s96 = sphi 0, %s93
      %s97 = sphi 0, %s96
      %s113 = sphi 0, %s97
    $region4: #{tpu_custom_call.1} parent=1 // loop_header_branch
      %18 = sbr.rel (%p16) target = $region8
    $region5: #{tpu_custom_call.1} parent=1 // loop_body
      %s20 = ssub.s32 %s15, 1
      %s21 = ssub.s32 %s15, 2
      %s22 = sadd.s32 %s15, 1
      %s23 = ssub.s32 %s15, %s22
      %p24 = scmp.eq.s32.totalorder %s23, 0
      %s26 = sadd.s32 %s25, 1
      %s27 = scalar_select %p24, %s25, %s26
      %p30 = pneg %p24
      %p31 = scmp.eq.s32.totalorder %s15, 1
      %p32 = por %p30, %p31
      %p33 = scmp.ne.s32.totalorder %s25, %s28
      %p34 = scmp.eq.s32.totalorder %s15, 0
      %p35 = por %p33, %p34
      %p36 = scmp.ne.s32.totalorder %s25, %s28
      %p37 = scmp.eq.s32.totalorder %s20, 1
      %p38 = por %p36, %p37
      %p39 = scmp.ne.s32.totalorder %s28, %s29
      %p40 = scmp.eq.s32.totalorder %s20, 0
      %p41 = por %p39, %p40
      %p42 = scmp.ne.s32.totalorder %s28, %s29
      %p43 = scmp.eq.s32.totalorder %s21, 1
      %p44 = por %p42, %p43
      %p46 = scmp.ne.s32.totalorder %s29, %s45
      %p47 = scmp.eq.s32.totalorder %s21, 0
      %p48 = por %p46, %p47
      %s50 = sadd.s32 %s49, 1
      %p53 = scmp.eq.s32.totalorder %s15, 1
      %p54 = scmp.ne.s32.totalorder %s49, %s51
      %p55 = scmp.eq.s32.totalorder %s15, 0
      %p56 = por %p54, %p55
      %p57 = scmp.ne.s32.totalorder %s49, %s51
      %p58 = scmp.eq.s32.totalorder %s20, 1
      %p59 = por %p57, %p58
      %p60 = scmp.ne.s32.totalorder %s51, %s52
      %p61 = scmp.eq.s32.totalorder %s20, 0
      %p62 = por %p60, %p61
      %p63 = scmp.ne.s32.totalorder %s51, %s52
      %p64 = scmp.eq.s32.totalorder %s21, 1
      %p65 = por %p63, %p64
      %p67 = scmp.ne.s32.totalorder %s52, %s66
      %p68 = scmp.eq.s32.totalorder %s21, 0
      %p69 = por %p67, %p68
      %s71 = sadd.s32 %s70, 1
      %p74 = scmp.eq.s32.totalorder %s15, 1
      %p75 = scmp.ne.s32.totalorder %s70, %s72
      %p76 = scmp.eq.s32.totalorder %s15, 0
      %p77 = por %p75, %p76
      %p78 = scmp.ne.s32.totalorder %s70, %s72
      %p79 = scmp.eq.s32.totalorder %s20, 1
      %p80 = por %p78, %p79
      %p81 = scmp.ne.s32.totalorder %s72, %s73
      %p82 = scmp.eq.s32.totalorder %s20, 0
      %p83 = por %p81, %p82
      %p84 = scmp.ne.s32.totalorder %s72, %s73
      %p85 = scmp.eq.s32.totalorder %s21, 1
      %p86 = por %p84, %p85
      %p88 = scmp.ne.s32.totalorder %s73, %s87
      %p89 = scmp.eq.s32.totalorder %s21, 0
      %p90 = por %p88, %p89
      %s91 = ssub.s32 %s15, %s22
      %p92 = scmp.eq.s32.totalorder %s91, 0
      %s94 = sadd.s32 %s93, 1
      %s95 = scalar_select %p92, %s93, %s94
      %p98 = pneg %p92
      %p99 = scmp.eq.s32.totalorder %s15, 1
      %p100 = por %p98, %p99
      %p101 = scmp.ne.s32.totalorder %s93, %s96
      %p102 = scmp.eq.s32.totalorder %s15, 0
      %p103 = por %p101, %p102
      %p104 = scmp.ne.s32.totalorder %s93, %s96
      %p105 = scmp.eq.s32.totalorder %s20, 1
      %p106 = por %p104, %p105
      %p107 = scmp.ne.s32.totalorder %s96, %s97
      %p108 = scmp.eq.s32.totalorder %s20, 0
      %p109 = por %p107, %p108
      %p110 = scmp.ne.s32.totalorder %s96, %s97
      %p111 = scmp.eq.s32.totalorder %s21, 1
      %p112 = por %p110, %p111
      %p114 = scmp.ne.s32.totalorder %s97, %s113
      %p115 = scmp.eq.s32.totalorder %s21, 0
      %p116 = por %p114, %p115
      %p117 = scmp.le.s32.totalorder 1, %s15
      %p118 = scmp.lt.s32.totalorder %s15, 3
      %p119 = pnand %p117, %p118
      %p120 = pneg %p119
      // Predicated region
      $region9: #{tpu_custom_call.1} parent=5 // pred_check
        _
      $region10: #{tpu_custom_call.1} parent=5 // pred_check_branch
        %122 = sbr.rel (%p119) target = $region12
      $region11: #{tpu_custom_call.1} parent=5 // pred_region
        %s123 = ssub.s32 %s15, 1
        // Predicated region
        $region13: #{tpu_custom_call.1} parent=11 // pred_check
          %p124 = pneg %p62
        $region14: #{tpu_custom_call.1} parent=11 // pred_check_branch
          %126 = sbr.rel (%p124) target = $region16
        $region15: #{tpu_custom_call.1} parent=11 // pred_region
          _
        $region16: #{tpu_custom_call.1} parent=11 // pred_fallthru
          _
        // Predicated region
        $region17: #{tpu_custom_call.1} parent=11 // pred_check
          %p127 = pneg %p83
        $region18: #{tpu_custom_call.1} parent=11 // pred_check_branch
          %129 = sbr.rel (%p127) target = $region20
        $region19: #{tpu_custom_call.1} parent=11 // pred_region
          _
        $region20: #{tpu_custom_call.1} parent=11 // pred_fallthru
          _
      $region12: #{tpu_custom_call.1} parent=5 // pred_fallthru
        _
      %p130 = scmp.lt.s32.totalorder %s15, 2
      // Predicated region
      $region21: #{tpu_custom_call.1} parent=5 // pred_check
        %p131 = pneg %p130
      $region22: #{tpu_custom_call.1} parent=5 // pred_check_branch
        %133 = sbr.rel (%p131) target = $region24
      $region23: #{tpu_custom_call.1} parent=5 // pred_region
        // Predicated region
        $region25: #{tpu_custom_call.1} parent=23 // pred_check
          %p134 = pneg %p35
        $region26: #{tpu_custom_call.1} parent=23 // pred_check_branch
          %136 = sbr.rel (%p134) target = $region28
        $region27: #{tpu_custom_call.1} parent=23 // pred_region
          %s137 = sand.u32 %s25, 1
          %s138 = scalar_lea.sflag [#allocation3], %s137
          %s139 = sand.u32 %s25, 1
          %s140 = smul.addr %s139, 64
          %s141 = scalar_lea.vmem [#allocation2], %s140
          %s143 = ssub.s32 1024, 1024
          %144 = vsyncadd %s138, %s143
          %s145 = smul.addr %s15, 8
          %s146 = smul.addr %s145, 128
          %s147 = scalar_lea.hbm %s0, %s146
          %s148 = sshll.u32 %s141, 4
          %s149 = int_to_ptr.vmem [resolvable:$true] %s148
          %154 = dma.hbm_to_vmem [thread:$0]  %s147, 1024, %s149, %s138, 128, 128, 8
        $region28: #{tpu_custom_call.1} parent=23 // pred_fallthru
          _
      $region24: #{tpu_custom_call.1} parent=5 // pred_fallthru
        _
      %p155 = scmp.le.s32.totalorder 1, %s15
      %p156 = scmp.lt.s32.totalorder %s15, 3
      %p157 = pnand %p155, %p156
      %p158 = pneg %p157
      // Predicated region
      $region29: #{tpu_custom_call.1} parent=5 // pred_check
        _
      $region30: #{tpu_custom_call.1} parent=5 // pred_check_branch
        %160 = sbr.rel (%p157) target = $region32
      $region31: #{tpu_custom_call.1} parent=5 // pred_region
        %s161 = ssub.s32 %s15, 1
        %s162 = sand.u32 %s28, 1
        %s163 = scalar_lea.sflag [#allocation3], %s162
        %s164 = sand.u32 %s28, 1
        %s165 = smul.addr %s164, 64
        %s166 = scalar_lea.vmem [#allocation2], %s165
        // Predicated region
        $region33: #{tpu_custom_call.1} parent=31 // pred_check
          %p167 = pneg %p41
        $region34: #{tpu_custom_call.1} parent=31 // pred_check_branch
          %169 = sbr.rel (%p167) target = $region36
        $region35: #{tpu_custom_call.1} parent=31 // pred_region
          %170 = dma.done %s163, 1024
        $region36: #{tpu_custom_call.1} parent=31 // pred_fallthru
          _
        %s171 = sand.u32 %s28, 1
        %s172 = scalar_lea.sflag [#allocation3], %s171
        %s173 = sand.u32 %s28, 1
        %s174 = smul.addr %s173, 64
        %s175 = scalar_lea.vmem [#allocation2], %s174
        %p176 = pneg %p41
        %p177 = pneg %p38
        %p178 = pneg %p62
        %p179 = pneg %p59
        %p180 = pneg %p83
        %p181 = pneg %p80
        %p182 = pneg %p109
        %p183 = pneg %p106
        %s184 = sand.u32 %s96, 1
        %s185 = scalar_lea.sflag [#allocation4], %s184
        %s186 = sand.u32 %s96, 1
        %s187 = smul.addr %s186, 64
        %s188 = scalar_lea.vmem [#allocation5], %s187
        %v189 = vld [vmem:[%s166] sm:$0xff]
        %v190 = vld [vmem:[%s166 + $0x8] sm:$0xff]
        %v191 = vld [vmem:[%s166 + $0x10] sm:$0xff]
        %v192 = vld [vmem:[%s166 + $0x18] sm:$0xff]
        %v193 = vld [vmem:[%s166 + $0x20] sm:$0xff]
        %v194 = vld [vmem:[%s166 + $0x28] sm:$0xff]
        %v195 = vld [vmem:[%s166 + $0x30] sm:$0xff]
        %v196 = vld [vmem:[%s166 + $0x38] sm:$0xff]
        %197 = vadd.xlane.f32.xlu0 %v189
        %v198 = vpop.xlane.xlu0 %197
        %199 = vadd.xlane.f32.xlu0 %v190
        %v200 = vpop.xlane.xlu0 %199
        %201 = vadd.xlane.f32.xlu0 %v191
        %v202 = vpop.xlane.xlu0 %201
        %203 = vadd.xlane.f32.xlu0 %v192
        %v204 = vpop.xlane.xlu0 %203
        %205 = vadd.xlane.f32.xlu0 %v193
        %v206 = vpop.xlane.xlu0 %205
        %207 = vadd.xlane.f32.xlu0 %v194
        %v208 = vpop.xlane.xlu0 %207
        %209 = vadd.xlane.f32.xlu0 %v195
        %v210 = vpop.xlane.xlu0 %209
        %211 = vadd.xlane.f32.xlu0 %v196
        %v212 = vpop.xlane.xlu0 %211
        %v213 = vmul.f32 %v198, 0.0078125
        %v214 = vmul.f32 %v200, 0.0078125
        %v215 = vmul.f32 %v202, 0.0078125
        %v216 = vmul.f32 %v204, 0.0078125
        %v217 = vmul.f32 %v206, 0.0078125
        %v218 = vmul.f32 %v208, 0.0078125
        %v219 = vmul.f32 %v210, 0.0078125
        %v220 = vmul.f32 %v212, 0.0078125
        %v221 = vld [vmem:[%s1] sm:$0xf]
        %v222 = vld [vmem:[%s2] sm:$0xff]
        %v223 = vld [vmem:[%s2 + $0x8] sm:$0xff]
        %v224 = vld [vmem:[%s2 + $0x10] sm:$0xff]
        %v225 = vld [vmem:[%s2 + $0x18] sm:$0xff]
        %v226 = vld [vmem:[%s2 + $0x20] sm:$0xff]
        %v227 = vld [vmem:[%s2 + $0x28] sm:$0xff]
        %v228 = vld [vmem:[%s2 + $0x30] sm:$0xff]
        %v229 = vld [vmem:[%s2 + $0x38] sm:$0xff]
        %v231 = vlaneseq
        %v232 = vshrl.u32 %v231, 7
        %v233 = vsub.s32 0, %v232
        %v234 = vrot.slane %v221, %v233
        %236 = vbcast.lane.b32.xlu0 %v234, 256
        %v237 = vpop.permute.xlu0 %236
        %s239 = sor.u32 256, 8
        %240 = vbcast.lane.b32.xlu0 %v234, %s239
        %v241 = vpop.permute.xlu0 %240
        %s243 = sor.u32 256, 16
        %244 = vbcast.lane.b32.xlu0 %v234, %s243
        %v245 = vpop.permute.xlu0 %244
        %s247 = sor.u32 256, 24
        %248 = vbcast.lane.b32.xlu0 %v234, %s247
        %v249 = vpop.permute.xlu0 %248
        %s251 = sor.u32 256, 32
        %252 = vbcast.lane.b32.xlu0 %v234, %s251
        %v253 = vpop.permute.xlu0 %252
        %s255 = sor.u32 256, 40
        %256 = vbcast.lane.b32.xlu0 %v234, %s255
        %v257 = vpop.permute.xlu0 %256
        %s259 = sor.u32 256, 48
        %260 = vbcast.lane.b32.xlu0 %v234, %s259
        %v261 = vpop.permute.xlu0 %260
        %s263 = sor.u32 256, 56
        %264 = vbcast.lane.b32.xlu0 %v234, %s263
        %v265 = vpop.permute.xlu0 %264
        %v266 = vlaneseq
        %v267 = vshrl.u32 %v266, 7
        %v268 = vsub.s32 1, %v267
        %v269 = vrot.slane %v221, %v268
        %271 = vbcast.lane.b32.xlu0 %v269, 256
        %v272 = vpop.permute.xlu0 %271
        %s274 = sor.u32 256, 8
        %275 = vbcast.lane.b32.xlu0 %v269, %s274
        %v276 = vpop.permute.xlu0 %275
        %s278 = sor.u32 256, 16
        %279 = vbcast.lane.b32.xlu0 %v269, %s278
        %v280 = vpop.permute.xlu0 %279
        %s282 = sor.u32 256, 24
        %283 = vbcast.lane.b32.xlu0 %v269, %s282
        %v284 = vpop.permute.xlu0 %283
        %s286 = sor.u32 256, 32
        %287 = vbcast.lane.b32.xlu0 %v269, %s286
        %v288 = vpop.permute.xlu0 %287
        %s290 = sor.u32 256, 40
        %291 = vbcast.lane.b32.xlu0 %v269, %s290
        %v292 = vpop.permute.xlu0 %291
        %s294 = sor.u32 256, 48
        %295 = vbcast.lane.b32.xlu0 %v269, %s294
        %v296 = vpop.permute.xlu0 %295
        %s298 = sor.u32 256, 56
        %299 = vbcast.lane.b32.xlu0 %v269, %s298
        %v300 = vpop.permute.xlu0 %299
        %v301 = vlaneseq
        %v302 = vshrl.u32 %v301, 7
        %v303 = vsub.s32 2, %v302
        %v304 = vrot.slane %v221, %v303
        %306 = vbcast.lane.b32.xlu0 %v304, 256
        %v307 = vpop.permute.xlu0 %306
        %s309 = sor.u32 256, 8
        %310 = vbcast.lane.b32.xlu0 %v304, %s309
        %v311 = vpop.permute.xlu0 %310
        %s313 = sor.u32 256, 16
        %314 = vbcast.lane.b32.xlu0 %v304, %s313
        %v315 = vpop.permute.xlu0 %314
        %s317 = sor.u32 256, 24
        %318 = vbcast.lane.b32.xlu0 %v304, %s317
        %v319 = vpop.permute.xlu0 %318
        %s321 = sor.u32 256, 32
        %322 = vbcast.lane.b32.xlu0 %v304, %s321
        %v323 = vpop.permute.xlu0 %322
        %s325 = sor.u32 256, 40
        %326 = vbcast.lane.b32.xlu0 %v304, %s325
        %v327 = vpop.permute.xlu0 %326
        %s329 = sor.u32 256, 48
        %330 = vbcast.lane.b32.xlu0 %v304, %s329
        %v331 = vpop.permute.xlu0 %330
        %s333 = sor.u32 256, 56
        %334 = vbcast.lane.b32.xlu0 %v304, %s333
        %v335 = vpop.permute.xlu0 %334
        %v336 = vlaneseq
        %v337 = vshrl.u32 %v336, 7
        %v338 = vsub.s32 3, %v337
        %v339 = vrot.slane %v221, %v338
        %341 = vbcast.lane.b32.xlu0 %v339, 256
        %v342 = vpop.permute.xlu0 %341
        %s344 = sor.u32 256, 8
        %345 = vbcast.lane.b32.xlu0 %v339, %s344
        %v346 = vpop.permute.xlu0 %345
        %s348 = sor.u32 256, 16
        %349 = vbcast.lane.b32.xlu0 %v339, %s348
        %v350 = vpop.permute.xlu0 %349
        %s352 = sor.u32 256, 24
        %353 = vbcast.lane.b32.xlu0 %v339, %s352
        %v354 = vpop.permute.xlu0 %353
        %s356 = sor.u32 256, 32
        %357 = vbcast.lane.b32.xlu0 %v339, %s356
        %v358 = vpop.permute.xlu0 %357
        %s360 = sor.u32 256, 40
        %361 = vbcast.lane.b32.xlu0 %v339, %s360
        %v362 = vpop.permute.xlu0 %361
        %s364 = sor.u32 256, 48
        %365 = vbcast.lane.b32.xlu0 %v339, %s364
        %v366 = vpop.permute.xlu0 %365
        %s368 = sor.u32 256, 56
        %369 = vbcast.lane.b32.xlu0 %v339, %s368
        %v370 = vpop.permute.xlu0 %369
        %v403 = vmul.f32 %v213, %v237
        %v404 = vmul.f32 %v214, %v241
        %v405 = vmul.f32 %v215, %v245
        %v406 = vmul.f32 %v216, %v249
        %v407 = vmul.f32 %v217, %v253
        %v408 = vmul.f32 %v218, %v257
        %v409 = vmul.f32 %v219, %v261
        %v410 = vmul.f32 %v220, %v265
        %v411 = vmul.f32 %v213, %v272
        %v412 = vmul.f32 %v214, %v276
        %v413 = vmul.f32 %v215, %v280
        %v414 = vmul.f32 %v216, %v284
        %v415 = vmul.f32 %v217, %v288
        %v416 = vmul.f32 %v218, %v292
        %v417 = vmul.f32 %v219, %v296
        %v418 = vmul.f32 %v220, %v300
        %v419 = vmul.f32 %v213, %v307
        %v420 = vmul.f32 %v214, %v311
        %v421 = vmul.f32 %v215, %v315
        %v422 = vmul.f32 %v216, %v319
        %v423 = vmul.f32 %v217, %v323
        %v424 = vmul.f32 %v218, %v327
        %v425 = vmul.f32 %v219, %v331
        %v426 = vmul.f32 %v220, %v335
        %v427 = vmul.f32 %v213, %v342
        %v428 = vmul.f32 %v214, %v346
        %v429 = vmul.f32 %v215, %v350
        %v430 = vmul.f32 %v216, %v354
        %v431 = vmul.f32 %v217, %v358
        %v432 = vmul.f32 %v218, %v362
        %v433 = vmul.f32 %v219, %v366
        %v434 = vmul.f32 %v220, %v370
        %467 = vset.pattern.permute.xlu0 0
        %468 = vperm.xlu0 %467, %v403
        %v469 = vpop.permute.xlu0 %468
        %470 = vset.pattern.permute.xlu0 0
        %471 = vperm.xlu0 %470, %v404
        %v472 = vpop.permute.xlu0 %471
        %473 = vset.pattern.permute.xlu0 0
        %474 = vperm.xlu0 %473, %v405
        %v475 = vpop.permute.xlu0 %474
        %476 = vset.pattern.permute.xlu0 0
        %477 = vperm.xlu0 %476, %v406
        %v478 = vpop.permute.xlu0 %477
        %479 = vset.pattern.permute.xlu0 0
        %480 = vperm.xlu0 %479, %v407
        %v481 = vpop.permute.xlu0 %480
        %482 = vset.pattern.permute.xlu0 0
        %483 = vperm.xlu0 %482, %v408
        %v484 = vpop.permute.xlu0 %483
        %485 = vset.pattern.permute.xlu0 0
        %486 = vperm.xlu0 %485, %v409
        %v487 = vpop.permute.xlu0 %486
        %488 = vset.pattern.permute.xlu0 0
        %489 = vperm.xlu0 %488, %v410
        %v490 = vpop.permute.xlu0 %489
        %491 = vset.pattern.permute.xlu0 0
        %492 = vperm.xlu0 %491, %v411
        %v493 = vpop.permute.xlu0 %492
        %494 = vset.pattern.permute.xlu0 0
        %495 = vperm.xlu0 %494, %v412
        %v496 = vpop.permute.xlu0 %495
        %497 = vset.pattern.permute.xlu0 0
        %498 = vperm.xlu0 %497, %v413
        %v499 = vpop.permute.xlu0 %498
        %500 = vset.pattern.permute.xlu0 0
        %501 = vperm.xlu0 %500, %v414
        %v502 = vpop.permute.xlu0 %501
        %503 = vset.pattern.permute.xlu0 0
        %504 = vperm.xlu0 %503, %v415
        %v505 = vpop.permute.xlu0 %504
        %506 = vset.pattern.permute.xlu0 0
        %507 = vperm.xlu0 %506, %v416
        %v508 = vpop.permute.xlu0 %507
        %509 = vset.pattern.permute.xlu0 0
        %510 = vperm.xlu0 %509, %v417
        %v511 = vpop.permute.xlu0 %510
        %512 = vset.pattern.permute.xlu0 0
        %513 = vperm.xlu0 %512, %v418
        %v514 = vpop.permute.xlu0 %513
        %515 = vset.pattern.permute.xlu0 0
        %516 = vperm.xlu0 %515, %v419
        %v517 = vpop.permute.xlu0 %516
        %518 = vset.pattern.permute.xlu0 0
        %519 = vperm.xlu0 %518, %v420
        %v520 = vpop.permute.xlu0 %519
        %521 = vset.pattern.permute.xlu0 0
        %522 = vperm.xlu0 %521, %v421
        %v523 = vpop.permute.xlu0 %522
        %524 = vset.pattern.permute.xlu0 0
        %525 = vperm.xlu0 %524, %v422
        %v526 = vpop.permute.xlu0 %525
        %527 = vset.pattern.permute.xlu0 0
        %528 = vperm.xlu0 %527, %v423
        %v529 = vpop.permute.xlu0 %528
        %530 = vset.pattern.permute.xlu0 0
        %531 = vperm.xlu0 %530, %v424
        %v532 = vpop.permute.xlu0 %531
        %533 = vset.pattern.permute.xlu0 0
        %534 = vperm.xlu0 %533, %v425
        %v535 = vpop.permute.xlu0 %534
        %536 = vset.pattern.permute.xlu0 0
        %537 = vperm.xlu0 %536, %v426
        %v538 = vpop.permute.xlu0 %537
        %539 = vset.pattern.permute.xlu0 0
        %540 = vperm.xlu0 %539, %v427
        %v541 = vpop.permute.xlu0 %540
        %542 = vset.pattern.permute.xlu0 0
        %543 = vperm.xlu0 %542, %v428
        %v544 = vpop.permute.xlu0 %543
        %545 = vset.pattern.permute.xlu0 0
        %546 = vperm.xlu0 %545, %v429
        %v547 = vpop.permute.xlu0 %546
        %548 = vset.pattern.permute.xlu0 0
        %549 = vperm.xlu0 %548, %v430
        %v550 = vpop.permute.xlu0 %549
        %551 = vset.pattern.permute.xlu0 0
        %552 = vperm.xlu0 %551, %v431
        %v553 = vpop.permute.xlu0 %552
        %554 = vset.pattern.permute.xlu0 0
        %555 = vperm.xlu0 %554, %v432
        %v556 = vpop.permute.xlu0 %555
        %557 = vset.pattern.permute.xlu0 0
        %558 = vperm.xlu0 %557, %v433
        %v559 = vpop.permute.xlu0 %558
        %560 = vset.pattern.permute.xlu0 0
        %561 = vperm.xlu0 %560, %v434
        %v562 = vpop.permute.xlu0 %561
        %v563 = vlaneseq
        %v564 = vand.u32 %v563, 127
        %v565 = vlaneseq
        %v566 = vshrl.u32 %v565, 7
        %v567 = vsub.s32 %v564, %v566
        %v568 = vrot.slane %v469, %v567
        %v569 = vadd.s32 %v564, 4294967288
        %v570 = vlaneseq
        %v571 = vshrl.u32 %v570, 7
        %v572 = vsub.s32 %v569, %v571
        %v573 = vrot.slane %v472, %v572
        %vm574 = vcmask 130112
        %v575 = vsel %vm574, %v573, %v568
        %v576 = vadd.s32 %v564, 4294967280
        %v577 = vlaneseq
        %v578 = vshrl.u32 %v577, 7
        %v579 = vsub.s32 %v576, %v578
        %v580 = vrot.slane %v475, %v579
        %vm581 = vcmask 195712
        %v582 = vsel %vm581, %v580, %v575
        %v583 = vadd.s32 %v564, 4294967272
        %v584 = vlaneseq
        %v585 = vshrl.u32 %v584, 7
        %v586 = vsub.s32 %v583, %v585
        %v587 = vrot.slane %v478, %v586
        %vm588 = vcmask 261312
        %v589 = vsel %vm588, %v587, %v582
        %v590 = vadd.s32 %v564, 4294967264
        %v591 = vlaneseq
        %v592 = vshrl.u32 %v591, 7
        %v593 = vsub.s32 %v590, %v592
        %v594 = vrot.slane %v481, %v593
        %vm595 = vcmask 326912
        %v596 = vsel %vm595, %v594, %v589
        %v597 = vadd.s32 %v564, 4294967256
        %v598 = vlaneseq
        %v599 = vshrl.u32 %v598, 7
        %v600 = vsub.s32 %v597, %v599
        %v601 = vrot.slane %v484, %v600
        %vm602 = vcmask 392512
        %v603 = vsel %vm602, %v601, %v596
        %v604 = vadd.s32 %v564, 4294967248
        %v605 = vlaneseq
        %v606 = vshrl.u32 %v605, 7
        %v607 = vsub.s32 %v604, %v606
        %v608 = vrot.slane %v487, %v607
        %vm609 = vcmask 458112
        %v610 = vsel %vm609, %v608, %v603
        %v611 = vadd.s32 %v564, 4294967240
        %v612 = vlaneseq
        %v613 = vshrl.u32 %v612, 7
        %v614 = vsub.s32 %v611, %v613
        %v615 = vrot.slane %v490, %v614
        %vm616 = vcmask 523712
        %v617 = vsel %vm616, %v615, %v610
        %v618 = vlaneseq
        %v619 = vshrl.u32 %v618, 7
        %v620 = vsub.s32 %v564, %v619
        %v621 = vrot.slane %v493, %v620
        %v622 = vlaneseq
        %v623 = vshrl.u32 %v622, 7
        %v624 = vsub.s32 %v569, %v623
        %v625 = vrot.slane %v496, %v624
        %v626 = vsel %vm574, %v625, %v621
        %v627 = vlaneseq
        %v628 = vshrl.u32 %v627, 7
        %v629 = vsub.s32 %v576, %v628
        %v630 = vrot.slane %v499, %v629
        %v631 = vsel %vm581, %v630, %v626
        %v632 = vlaneseq
        %v633 = vshrl.u32 %v632, 7
        %v634 = vsub.s32 %v583, %v633
        %v635 = vrot.slane %v502, %v634
        %v636 = vsel %vm588, %v635, %v631
        %v637 = vlaneseq
        %v638 = vshrl.u32 %v637, 7
        %v639 = vsub.s32 %v590, %v638
        %v640 = vrot.slane %v505, %v639
        %v641 = vsel %vm595, %v640, %v636
        %v642 = vlaneseq
        %v643 = vshrl.u32 %v642, 7
        %v644 = vsub.s32 %v597, %v643
        %v645 = vrot.slane %v508, %v644
        %v646 = vsel %vm602, %v645, %v641
        %v647 = vlaneseq
        %v648 = vshrl.u32 %v647, 7
        %v649 = vsub.s32 %v604, %v648
        %v650 = vrot.slane %v511, %v649
        %v651 = vsel %vm609, %v650, %v646
        %v652 = vlaneseq
        %v653 = vshrl.u32 %v652, 7
        %v654 = vsub.s32 %v611, %v653
        %v655 = vrot.slane %v514, %v654
        %v656 = vsel %vm616, %v655, %v651
        %v657 = vlaneseq
        %v658 = vshrl.u32 %v657, 7
        %v659 = vsub.s32 %v564, %v658
        %v660 = vrot.slane %v517, %v659
        %v661 = vlaneseq
        %v662 = vshrl.u32 %v661, 7
        %v663 = vsub.s32 %v569, %v662
        %v664 = vrot.slane %v520, %v663
        %v665 = vsel %vm574, %v664, %v660
        %v666 = vlaneseq
        %v667 = vshrl.u32 %v666, 7
        %v668 = vsub.s32 %v576, %v667
        %v669 = vrot.slane %v523, %v668
        %v670 = vsel %vm581, %v669, %v665
        %v671 = vlaneseq
        %v672 = vshrl.u32 %v671, 7
        %v673 = vsub.s32 %v583, %v672
        %v674 = vrot.slane %v526, %v673
        %v675 = vsel %vm588, %v674, %v670
        %v676 = vlaneseq
        %v677 = vshrl.u32 %v676, 7
        %v678 = vsub.s32 %v590, %v677
        %v679 = vrot.slane %v529, %v678
        %v680 = vsel %vm595, %v679, %v675
        %v681 = vlaneseq
        %v682 = vshrl.u32 %v681, 7
        %v683 = vsub.s32 %v597, %v682
        %v684 = vrot.slane %v532, %v683
        %v685 = vsel %vm602, %v684, %v680
        %v686 = vlaneseq
        %v687 = vshrl.u32 %v686, 7
        %v688 = vsub.s32 %v604, %v687
        %v689 = vrot.slane %v535, %v688
        %v690 = vsel %vm609, %v689, %v685
        %v691 = vlaneseq
        %v692 = vshrl.u32 %v691, 7
        %v693 = vsub.s32 %v611, %v692
        %v694 = vrot.slane %v538, %v693
        %v695 = vsel %vm616, %v694, %v690
        %v696 = vlaneseq
        %v697 = vshrl.u32 %v696, 7
        %v698 = vsub.s32 %v564, %v697
        %v699 = vrot.slane %v541, %v698
        %v700 = vlaneseq
        %v701 = vshrl.u32 %v700, 7
        %v702 = vsub.s32 %v569, %v701
        %v703 = vrot.slane %v544, %v702
        %v704 = vsel %vm574, %v703, %v699
        %v705 = vlaneseq
        %v706 = vshrl.u32 %v705, 7
        %v707 = vsub.s32 %v576, %v706
        %v708 = vrot.slane %v547, %v707
        %v709 = vsel %vm581, %v708, %v704
        %v710 = vlaneseq
        %v711 = vshrl.u32 %v710, 7
        %v712 = vsub.s32 %v583, %v711
        %v713 = vrot.slane %v550, %v712
        %v714 = vsel %vm588, %v713, %v709
        %v715 = vlaneseq
        %v716 = vshrl.u32 %v715, 7
        %v717 = vsub.s32 %v590, %v716
        %v718 = vrot.slane %v553, %v717
        %v719 = vsel %vm595, %v718, %v714
        %v720 = vlaneseq
        %v721 = vshrl.u32 %v720, 7
        %v722 = vsub.s32 %v597, %v721
        %v723 = vrot.slane %v556, %v722
        %v724 = vsel %vm602, %v723, %v719
        %v725 = vlaneseq
        %v726 = vshrl.u32 %v725, 7
        %v727 = vsub.s32 %v604, %v726
        %v728 = vrot.slane %v559, %v727
        %v729 = vsel %vm609, %v728, %v724
        %v730 = vlaneseq
        %v731 = vshrl.u32 %v730, 7
        %v732 = vsub.s32 %v611, %v731
        %v733 = vrot.slane %v562, %v732
        %v734 = vsel %vm616, %v733, %v729
        %vm735 = vcmask 1041409
        %v736 = vsel %vm735, %v656, %v617
        %vm737 = vcmask 1042434
        %v738 = vsel %vm737, %v695, %v736
        %vm739 = vcmask 1043459
        %v740 = vsel %vm739, %v734, %v738
        %vm742 = vcmask 519168
        %v743 = vsel %vm742, %v740, 0.0
        %744 = vadd.xlane.f32.xlu0 %v743
        %v745 = vpop.xlane.xlu0 %744
        %v746 = vmul.f32 %v745, 0.5
        %v747 = vmul.f32 %v745, 0.70710677
        %v748 = verf.f32.pop %v747
        %v749 = vadd.f32 %v748, 1.0
        %v750 = vmul.f32 %v746, %v749
        %v759 = vlaneseq
        %v760 = vshrl.u32 %v759, 7
        %v761 = vsub.s32 0, %v760
        %v762 = vrot.slane %v222, %v761
        %764 = vbcast.lane.b32.xlu0 %v762, 256
        %v765 = vpop.permute.xlu0 %764
        %v766 = vlaneseq
        %v767 = vshrl.u32 %v766, 7
        %v768 = vsub.s32 1, %v767
        %v769 = vrot.slane %v222, %v768
        %771 = vbcast.lane.b32.xlu0 %v769, 256
        %v772 = vpop.permute.xlu0 %771
        %v773 = vlaneseq
        %v774 = vshrl.u32 %v773, 7
        %v775 = vsub.s32 2, %v774
        %v776 = vrot.slane %v222, %v775
        %778 = vbcast.lane.b32.xlu0 %v776, 256
        %v779 = vpop.permute.xlu0 %778
        %v780 = vlaneseq
        %v781 = vshrl.u32 %v780, 7
        %v782 = vsub.s32 3, %v781
        %v783 = vrot.slane %v222, %v782
        %785 = vbcast.lane.b32.xlu0 %v783, 256
        %v786 = vpop.permute.xlu0 %785
        %v787 = vlaneseq
        %v788 = vshrl.u32 %v787, 7
        %v789 = vsub.s32 4, %v788
        %v790 = vrot.slane %v222, %v789
        %792 = vbcast.lane.b32.xlu0 %v790, 256
        %v793 = vpop.permute.xlu0 %792
        %v794 = vlaneseq
        %v795 = vshrl.u32 %v794, 7
        %v796 = vsub.s32 5, %v795
        %v797 = vrot.slane %v222, %v796
        %799 = vbcast.lane.b32.xlu0 %v797, 256
        %v800 = vpop.permute.xlu0 %799
        %v801 = vlaneseq
        %v802 = vshrl.u32 %v801, 7
        %v803 = vsub.s32 6, %v802
        %v804 = vrot.slane %v222, %v803
        %806 = vbcast.lane.b32.xlu0 %v804, 256
        %v807 = vpop.permute.xlu0 %806
        %v808 = vlaneseq
        %v809 = vshrl.u32 %v808, 7
        %v810 = vsub.s32 7, %v809
        %v811 = vrot.slane %v222, %v810
        %813 = vbcast.lane.b32.xlu0 %v811, 256
        %v814 = vpop.permute.xlu0 %813
        %v815 = vlaneseq
        %v816 = vshrl.u32 %v815, 7
        %v817 = vsub.s32 0, %v816
        %v818 = vrot.slane %v223, %v817
        %820 = vbcast.lane.b32.xlu0 %v818, 256
        %v821 = vpop.permute.xlu0 %820
        %v822 = vlaneseq
        %v823 = vshrl.u32 %v822, 7
        %v824 = vsub.s32 1, %v823
        %v825 = vrot.slane %v223, %v824
        %827 = vbcast.lane.b32.xlu0 %v825, 256
        %v828 = vpop.permute.xlu0 %827
        %v829 = vlaneseq
        %v830 = vshrl.u32 %v829, 7
        %v831 = vsub.s32 2, %v830
        %v832 = vrot.slane %v223, %v831
        %834 = vbcast.lane.b32.xlu0 %v832, 256
        %v835 = vpop.permute.xlu0 %834
        %v836 = vlaneseq
        %v837 = vshrl.u32 %v836, 7
        %v838 = vsub.s32 3, %v837
        %v839 = vrot.slane %v223, %v838
        %841 = vbcast.lane.b32.xlu0 %v839, 256
        %v842 = vpop.permute.xlu0 %841
        %v843 = vlaneseq
        %v844 = vshrl.u32 %v843, 7
        %v845 = vsub.s32 4, %v844
        %v846 = vrot.slane %v223, %v845
        %848 = vbcast.lane.b32.xlu0 %v846, 256
        %v849 = vpop.permute.xlu0 %848
        %v850 = vlaneseq
        %v851 = vshrl.u32 %v850, 7
        %v852 = vsub.s32 5, %v851
        %v853 = vrot.slane %v223, %v852
        %855 = vbcast.lane.b32.xlu0 %v853, 256
        %v856 = vpop.permute.xlu0 %855
        %v857 = vlaneseq
        %v858 = vshrl.u32 %v857, 7
        %v859 = vsub.s32 6, %v858
        %v860 = vrot.slane %v223, %v859
        %862 = vbcast.lane.b32.xlu0 %v860, 256
        %v863 = vpop.permute.xlu0 %862
        %v864 = vlaneseq
        %v865 = vshrl.u32 %v864, 7
        %v866 = vsub.s32 7, %v865
        %v867 = vrot.slane %v223, %v866
        %869 = vbcast.lane.b32.xlu0 %v867, 256
        %v870 = vpop.permute.xlu0 %869
        %v871 = vlaneseq
        %v872 = vshrl.u32 %v871, 7
        %v873 = vsub.s32 0, %v872
        %v874 = vrot.slane %v224, %v873
        %876 = vbcast.lane.b32.xlu0 %v874, 256
        %v877 = vpop.permute.xlu0 %876
        %v878 = vlaneseq
        %v879 = vshrl.u32 %v878, 7
        %v880 = vsub.s32 1, %v879
        %v881 = vrot.slane %v224, %v880
        %883 = vbcast.lane.b32.xlu0 %v881, 256
        %v884 = vpop.permute.xlu0 %883
        %v885 = vlaneseq
        %v886 = vshrl.u32 %v885, 7
        %v887 = vsub.s32 2, %v886
        %v888 = vrot.slane %v224, %v887
        %890 = vbcast.lane.b32.xlu0 %v888, 256
        %v891 = vpop.permute.xlu0 %890
        %v892 = vlaneseq
        %v893 = vshrl.u32 %v892, 7
        %v894 = vsub.s32 3, %v893
        %v895 = vrot.slane %v224, %v894
        %897 = vbcast.lane.b32.xlu0 %v895, 256
        %v898 = vpop.permute.xlu0 %897
        %v899 = vlaneseq
        %v900 = vshrl.u32 %v899, 7
        %v901 = vsub.s32 4, %v900
        %v902 = vrot.slane %v224, %v901
        %904 = vbcast.lane.b32.xlu0 %v902, 256
        %v905 = vpop.permute.xlu0 %904
        %v906 = vlaneseq
        %v907 = vshrl.u32 %v906, 7
        %v908 = vsub.s32 5, %v907
        %v909 = vrot.slane %v224, %v908
        %911 = vbcast.lane.b32.xlu0 %v909, 256
        %v912 = vpop.permute.xlu0 %911
        %v913 = vlaneseq
        %v914 = vshrl.u32 %v913, 7
        %v915 = vsub.s32 6, %v914
        %v916 = vrot.slane %v224, %v915
        %918 = vbcast.lane.b32.xlu0 %v916, 256
        %v919 = vpop.permute.xlu0 %918
        %v920 = vlaneseq
        %v921 = vshrl.u32 %v920, 7
        %v922 = vsub.s32 7, %v921
        %v923 = vrot.slane %v224, %v922
        %925 = vbcast.lane.b32.xlu0 %v923, 256
        %v926 = vpop.permute.xlu0 %925
        %v927 = vlaneseq
        %v928 = vshrl.u32 %v927, 7
        %v929 = vsub.s32 0, %v928
        %v930 = vrot.slane %v225, %v929
        %932 = vbcast.lane.b32.xlu0 %v930, 256
        %v933 = vpop.permute.xlu0 %932
        %v934 = vlaneseq
        %v935 = vshrl.u32 %v934, 7
        %v936 = vsub.s32 1, %v935
        %v937 = vrot.slane %v225, %v936
        %939 = vbcast.lane.b32.xlu0 %v937, 256
        %v940 = vpop.permute.xlu0 %939
        %v941 = vlaneseq
        %v942 = vshrl.u32 %v941, 7
        %v943 = vsub.s32 2, %v942
        %v944 = vrot.slane %v225, %v943
        %946 = vbcast.lane.b32.xlu0 %v944, 256
        %v947 = vpop.permute.xlu0 %946
        %v948 = vlaneseq
        %v949 = vshrl.u32 %v948, 7
        %v950 = vsub.s32 3, %v949
        %v951 = vrot.slane %v225, %v950
        %953 = vbcast.lane.b32.xlu0 %v951, 256
        %v954 = vpop.permute.xlu0 %953
        %v955 = vlaneseq
        %v956 = vshrl.u32 %v955, 7
        %v957 = vsub.s32 4, %v956
        %v958 = vrot.slane %v225, %v957
        %960 = vbcast.lane.b32.xlu0 %v958, 256
        %v961 = vpop.permute.xlu0 %960
        %v962 = vlaneseq
        %v963 = vshrl.u32 %v962, 7
        %v964 = vsub.s32 5, %v963
        %v965 = vrot.slane %v225, %v964
        %967 = vbcast.lane.b32.xlu0 %v965, 256
        %v968 = vpop.permute.xlu0 %967
        %v969 = vlaneseq
        %v970 = vshrl.u32 %v969, 7
        %v971 = vsub.s32 6, %v970
        %v972 = vrot.slane %v225, %v971
        %974 = vbcast.lane.b32.xlu0 %v972, 256
        %v975 = vpop.permute.xlu0 %974
        %v976 = vlaneseq
        %v977 = vshrl.u32 %v976, 7
        %v978 = vsub.s32 7, %v977
        %v979 = vrot.slane %v225, %v978
        %981 = vbcast.lane.b32.xlu0 %v979, 256
        %v982 = vpop.permute.xlu0 %981
        %v983 = vlaneseq
        %v984 = vshrl.u32 %v983, 7
        %v985 = vsub.s32 0, %v984
        %v986 = vrot.slane %v226, %v985
        %988 = vbcast.lane.b32.xlu0 %v986, 256
        %v989 = vpop.permute.xlu0 %988
        %v990 = vlaneseq
        %v991 = vshrl.u32 %v990, 7
        %v992 = vsub.s32 1, %v991
        %v993 = vrot.slane %v226, %v992
        %995 = vbcast.lane.b32.xlu0 %v993, 256
        %v996 = vpop.permute.xlu0 %995
        %v997 = vlaneseq
        %v998 = vshrl.u32 %v997, 7
        %v999 = vsub.s32 2, %v998
        %v1000 = vrot.slane %v226, %v999
        %1002 = vbcast.lane.b32.xlu0 %v1000, 256
        %v1003 = vpop.permute.xlu0 %1002
        %v1004 = vlaneseq
        %v1005 = vshrl.u32 %v1004, 7
        %v1006 = vsub.s32 3, %v1005
        %v1007 = vrot.slane %v226, %v1006
        %1009 = vbcast.lane.b32.xlu0 %v1007, 256
        %v1010 = vpop.permute.xlu0 %1009
        %v1011 = vlaneseq
        %v1012 = vshrl.u32 %v1011, 7
        %v1013 = vsub.s32 4, %v1012
        %v1014 = vrot.slane %v226, %v1013
        %1016 = vbcast.lane.b32.xlu0 %v1014, 256
        %v1017 = vpop.permute.xlu0 %1016
        %v1018 = vlaneseq
        %v1019 = vshrl.u32 %v1018, 7
        %v1020 = vsub.s32 5, %v1019
        %v1021 = vrot.slane %v226, %v1020
        %1023 = vbcast.lane.b32.xlu0 %v1021, 256
        %v1024 = vpop.permute.xlu0 %1023
        %v1025 = vlaneseq
        %v1026 = vshrl.u32 %v1025, 7
        %v1027 = vsub.s32 6, %v1026
        %v1028 = vrot.slane %v226, %v1027
        %1030 = vbcast.lane.b32.xlu0 %v1028, 256
        %v1031 = vpop.permute.xlu0 %1030
        %v1032 = vlaneseq
        %v1033 = vshrl.u32 %v1032, 7
        %v1034 = vsub.s32 7, %v1033
        %v1035 = vrot.slane %v226, %v1034
        %1037 = vbcast.lane.b32.xlu0 %v1035, 256
        %v1038 = vpop.permute.xlu0 %1037
        %v1039 = vlaneseq
        %v1040 = vshrl.u32 %v1039, 7
        %v1041 = vsub.s32 0, %v1040
        %v1042 = vrot.slane %v227, %v1041
        %1044 = vbcast.lane.b32.xlu0 %v1042, 256
        %v1045 = vpop.permute.xlu0 %1044
        %v1046 = vlaneseq
        %v1047 = vshrl.u32 %v1046, 7
        %v1048 = vsub.s32 1, %v1047
        %v1049 = vrot.slane %v227, %v1048
        %1051 = vbcast.lane.b32.xlu0 %v1049, 256
        %v1052 = vpop.permute.xlu0 %1051
        %v1053 = vlaneseq
        %v1054 = vshrl.u32 %v1053, 7
        %v1055 = vsub.s32 2, %v1054
        %v1056 = vrot.slane %v227, %v1055
        %1058 = vbcast.lane.b32.xlu0 %v1056, 256
        %v1059 = vpop.permute.xlu0 %1058
        %v1060 = vlaneseq
        %v1061 = vshrl.u32 %v1060, 7
        %v1062 = vsub.s32 3, %v1061
        %v1063 = vrot.slane %v227, %v1062
        %1065 = vbcast.lane.b32.xlu0 %v1063, 256
        %v1066 = vpop.permute.xlu0 %1065
        %v1067 = vlaneseq
        %v1068 = vshrl.u32 %v1067, 7
        %v1069 = vsub.s32 4, %v1068
        %v1070 = vrot.slane %v227, %v1069
        %1072 = vbcast.lane.b32.xlu0 %v1070, 256
        %v1073 = vpop.permute.xlu0 %1072
        %v1074 = vlaneseq
        %v1075 = vshrl.u32 %v1074, 7
        %v1076 = vsub.s32 5, %v1075
        %v1077 = vrot.slane %v227, %v1076
        %1079 = vbcast.lane.b32.xlu0 %v1077, 256
        %v1080 = vpop.permute.xlu0 %1079
        %v1081 = vlaneseq
        %v1082 = vshrl.u32 %v1081, 7
        %v1083 = vsub.s32 6, %v1082
        %v1084 = vrot.slane %v227, %v1083
        %1086 = vbcast.lane.b32.xlu0 %v1084, 256
        %v1087 = vpop.permute.xlu0 %1086
        %v1088 = vlaneseq
        %v1089 = vshrl.u32 %v1088, 7
        %v1090 = vsub.s32 7, %v1089
        %v1091 = vrot.slane %v227, %v1090
        %1093 = vbcast.lane.b32.xlu0 %v1091, 256
        %v1094 = vpop.permute.xlu0 %1093
        %v1095 = vlaneseq
        %v1096 = vshrl.u32 %v1095, 7
        %v1097 = vsub.s32 0, %v1096
        %v1098 = vrot.slane %v228, %v1097
        %1100 = vbcast.lane.b32.xlu0 %v1098, 256
        %v1101 = vpop.permute.xlu0 %1100
        %v1102 = vlaneseq
        %v1103 = vshrl.u32 %v1102, 7
        %v1104 = vsub.s32 1, %v1103
        %v1105 = vrot.slane %v228, %v1104
        %1107 = vbcast.lane.b32.xlu0 %v1105, 256
        %v1108 = vpop.permute.xlu0 %1107
        %v1109 = vlaneseq
        %v1110 = vshrl.u32 %v1109, 7
        %v1111 = vsub.s32 2, %v1110
        %v1112 = vrot.slane %v228, %v1111
        %1114 = vbcast.lane.b32.xlu0 %v1112, 256
        %v1115 = vpop.permute.xlu0 %1114
        %v1116 = vlaneseq
        %v1117 = vshrl.u32 %v1116, 7
        %v1118 = vsub.s32 3, %v1117
        %v1119 = vrot.slane %v228, %v1118
        %1121 = vbcast.lane.b32.xlu0 %v1119, 256
        %v1122 = vpop.permute.xlu0 %1121
        %v1123 = vlaneseq
        %v1124 = vshrl.u32 %v1123, 7
        %v1125 = vsub.s32 4, %v1124
        %v1126 = vrot.slane %v228, %v1125
        %1128 = vbcast.lane.b32.xlu0 %v1126, 256
        %v1129 = vpop.permute.xlu0 %1128
        %v1130 = vlaneseq
        %v1131 = vshrl.u32 %v1130, 7
        %v1132 = vsub.s32 5, %v1131
        %v1133 = vrot.slane %v228, %v1132
        %1135 = vbcast.lane.b32.xlu0 %v1133, 256
        %v1136 = vpop.permute.xlu0 %1135
        %v1137 = vlaneseq
        %v1138 = vshrl.u32 %v1137, 7
        %v1139 = vsub.s32 6, %v1138
        %v1140 = vrot.slane %v228, %v1139
        %1142 = vbcast.lane.b32.xlu0 %v1140, 256
        %v1143 = vpop.permute.xlu0 %1142
        %v1144 = vlaneseq
        %v1145 = vshrl.u32 %v1144, 7
        %v1146 = vsub.s32 7, %v1145
        %v1147 = vrot.slane %v228, %v1146
        %1149 = vbcast.lane.b32.xlu0 %v1147, 256
        %v1150 = vpop.permute.xlu0 %1149
        %v1151 = vlaneseq
        %v1152 = vshrl.u32 %v1151, 7
        %v1153 = vsub.s32 0, %v1152
        %v1154 = vrot.slane %v229, %v1153
        %1156 = vbcast.lane.b32.xlu0 %v1154, 256
        %v1157 = vpop.permute.xlu0 %1156
        %v1158 = vlaneseq
        %v1159 = vshrl.u32 %v1158, 7
        %v1160 = vsub.s32 1, %v1159
        %v1161 = vrot.slane %v229, %v1160
        %1163 = vbcast.lane.b32.xlu0 %v1161, 256
        %v1164 = vpop.permute.xlu0 %1163
        %v1165 = vlaneseq
        %v1166 = vshrl.u32 %v1165, 7
        %v1167 = vsub.s32 2, %v1166
        %v1168 = vrot.slane %v229, %v1167
        %1170 = vbcast.lane.b32.xlu0 %v1168, 256
        %v1171 = vpop.permute.xlu0 %1170
        %v1172 = vlaneseq
        %v1173 = vshrl.u32 %v1172, 7
        %v1174 = vsub.s32 3, %v1173
        %v1175 = vrot.slane %v229, %v1174
        %1177 = vbcast.lane.b32.xlu0 %v1175, 256
        %v1178 = vpop.permute.xlu0 %1177
        %v1179 = vlaneseq
        %v1180 = vshrl.u32 %v1179, 7
        %v1181 = vsub.s32 4, %v1180
        %v1182 = vrot.slane %v229, %v1181
        %1184 = vbcast.lane.b32.xlu0 %v1182, 256
        %v1185 = vpop.permute.xlu0 %1184
        %v1186 = vlaneseq
        %v1187 = vshrl.u32 %v1186, 7
        %v1188 = vsub.s32 5, %v1187
        %v1189 = vrot.slane %v229, %v1188
        %1191 = vbcast.lane.b32.xlu0 %v1189, 256
        %v1192 = vpop.permute.xlu0 %1191
        %v1193 = vlaneseq
        %v1194 = vshrl.u32 %v1193, 7
        %v1195 = vsub.s32 6, %v1194
        %v1196 = vrot.slane %v229, %v1195
        %1198 = vbcast.lane.b32.xlu0 %v1196, 256
        %v1199 = vpop.permute.xlu0 %1198
        %v1200 = vlaneseq
        %v1201 = vshrl.u32 %v1200, 7
        %v1202 = vsub.s32 7, %v1201
        %v1203 = vrot.slane %v229, %v1202
        %1205 = vbcast.lane.b32.xlu0 %v1203, 256
        %v1206 = vpop.permute.xlu0 %1205
        %v1271 = vmul.f32 %v750, %v765
        %v1272 = vmul.f32 %v750, %v772
        %v1273 = vmul.f32 %v750, %v779
        %v1274 = vmul.f32 %v750, %v786
        %v1275 = vmul.f32 %v750, %v793
        %v1276 = vmul.f32 %v750, %v800
        %v1277 = vmul.f32 %v750, %v807
        %v1278 = vmul.f32 %v750, %v814
        %v1279 = vmul.f32 %v750, %v821
        %v1280 = vmul.f32 %v750, %v828
        %v1281 = vmul.f32 %v750, %v835
        %v1282 = vmul.f32 %v750, %v842
        %v1283 = vmul.f32 %v750, %v849
        %v1284 = vmul.f32 %v750, %v856
        %v1285 = vmul.f32 %v750, %v863
        %v1286 = vmul.f32 %v750, %v870
        %v1287 = vmul.f32 %v750, %v877
        %v1288 = vmul.f32 %v750, %v884
        %v1289 = vmul.f32 %v750, %v891
        %v1290 = vmul.f32 %v750, %v898
        %v1291 = vmul.f32 %v750, %v905
        %v1292 = vmul.f32 %v750, %v912
        %v1293 = vmul.f32 %v750, %v919
        %v1294 = vmul.f32 %v750, %v926
        %v1295 = vmul.f32 %v750, %v933
        %v1296 = vmul.f32 %v750, %v940
        %v1297 = vmul.f32 %v750, %v947
        %v1298 = vmul.f32 %v750, %v954
        %v1299 = vmul.f32 %v750, %v961
        %v1300 = vmul.f32 %v750, %v968
        %v1301 = vmul.f32 %v750, %v975
        %v1302 = vmul.f32 %v750, %v982
        %v1303 = vmul.f32 %v750, %v989
        %v1304 = vmul.f32 %v750, %v996
        %v1305 = vmul.f32 %v750, %v1003
        %v1306 = vmul.f32 %v750, %v1010
        %v1307 = vmul.f32 %v750, %v1017
        %v1308 = vmul.f32 %v750, %v1024
        %v1309 = vmul.f32 %v750, %v1031
        %v1310 = vmul.f32 %v750, %v1038
        %v1311 = vmul.f32 %v750, %v1045
        %v1312 = vmul.f32 %v750, %v1052
        %v1313 = vmul.f32 %v750, %v1059
        %v1314 = vmul.f32 %v750, %v1066
        %v1315 = vmul.f32 %v750, %v1073
        %v1316 = vmul.f32 %v750, %v1080
        %v1317 = vmul.f32 %v750, %v1087
        %v1318 = vmul.f32 %v750, %v1094
        %v1319 = vmul.f32 %v750, %v1101
        %v1320 = vmul.f32 %v750, %v1108
        %v1321 = vmul.f32 %v750, %v1115
        %v1322 = vmul.f32 %v750, %v1122
        %v1323 = vmul.f32 %v750, %v1129
        %v1324 = vmul.f32 %v750, %v1136
        %v1325 = vmul.f32 %v750, %v1143
        %v1326 = vmul.f32 %v750, %v1150
        %v1327 = vmul.f32 %v750, %v1157
        %v1328 = vmul.f32 %v750, %v1164
        %v1329 = vmul.f32 %v750, %v1171
        %v1330 = vmul.f32 %v750, %v1178
        %v1331 = vmul.f32 %v750, %v1185
        %v1332 = vmul.f32 %v750, %v1192
        %v1333 = vmul.f32 %v750, %v1199
        %v1334 = vmul.f32 %v750, %v1206
        %1399 = vset.pattern.permute.xlu0 0
        %1400 = vperm.xlu0 %1399, %v1271
        %v1401 = vpop.permute.xlu0 %1400
        %1402 = vset.pattern.permute.xlu0 0
        %1403 = vperm.xlu0 %1402, %v1272
        %v1404 = vpop.permute.xlu0 %1403
        %1405 = vset.pattern.permute.xlu0 0
        %1406 = vperm.xlu0 %1405, %v1273
        %v1407 = vpop.permute.xlu0 %1406
        %1408 = vset.pattern.permute.xlu0 0
        %1409 = vperm.xlu0 %1408, %v1274
        %v1410 = vpop.permute.xlu0 %1409
        %1411 = vset.pattern.permute.xlu0 0
        %1412 = vperm.xlu0 %1411, %v1275
        %v1413 = vpop.permute.xlu0 %1412
        %1414 = vset.pattern.permute.xlu0 0
        %1415 = vperm.xlu0 %1414, %v1276
        %v1416 = vpop.permute.xlu0 %1415
        %1417 = vset.pattern.permute.xlu0 0
        %1418 = vperm.xlu0 %1417, %v1277
        %v1419 = vpop.permute.xlu0 %1418
        %1420 = vset.pattern.permute.xlu0 0
        %1421 = vperm.xlu0 %1420, %v1278
        %v1422 = vpop.permute.xlu0 %1421
        %1423 = vset.pattern.permute.xlu0 0
        %1424 = vperm.xlu0 %1423, %v1279
        %v1425 = vpop.permute.xlu0 %1424
        %1426 = vset.pattern.permute.xlu0 0
        %1427 = vperm.xlu0 %1426, %v1280
        %v1428 = vpop.permute.xlu0 %1427
        %1429 = vset.pattern.permute.xlu0 0
        %1430 = vperm.xlu0 %1429, %v1281
        %v1431 = vpop.permute.xlu0 %1430
        %1432 = vset.pattern.permute.xlu0 0
        %1433 = vperm.xlu0 %1432, %v1282
        %v1434 = vpop.permute.xlu0 %1433
        %1435 = vset.pattern.permute.xlu0 0
        %1436 = vperm.xlu0 %1435, %v1283
        %v1437 = vpop.permute.xlu0 %1436
        %1438 = vset.pattern.permute.xlu0 0
        %1439 = vperm.xlu0 %1438, %v1284
        %v1440 = vpop.permute.xlu0 %1439
        %1441 = vset.pattern.permute.xlu0 0
        %1442 = vperm.xlu0 %1441, %v1285
        %v1443 = vpop.permute.xlu0 %1442
        %1444 = vset.pattern.permute.xlu0 0
        %1445 = vperm.xlu0 %1444, %v1286
        %v1446 = vpop.permute.xlu0 %1445
        %1447 = vset.pattern.permute.xlu0 0
        %1448 = vperm.xlu0 %1447, %v1287
        %v1449 = vpop.permute.xlu0 %1448
        %1450 = vset.pattern.permute.xlu0 0
        %1451 = vperm.xlu0 %1450, %v1288
        %v1452 = vpop.permute.xlu0 %1451
        %1453 = vset.pattern.permute.xlu0 0
        %1454 = vperm.xlu0 %1453, %v1289
        %v1455 = vpop.permute.xlu0 %1454
        %1456 = vset.pattern.permute.xlu0 0
        %1457 = vperm.xlu0 %1456, %v1290
        %v1458 = vpop.permute.xlu0 %1457
        %1459 = vset.pattern.permute.xlu0 0
        %1460 = vperm.xlu0 %1459, %v1291
        %v1461 = vpop.permute.xlu0 %1460
        %1462 = vset.pattern.permute.xlu0 0
        %1463 = vperm.xlu0 %1462, %v1292
        %v1464 = vpop.permute.xlu0 %1463
        %1465 = vset.pattern.permute.xlu0 0
        %1466 = vperm.xlu0 %1465, %v1293
        %v1467 = vpop.permute.xlu0 %1466
        %1468 = vset.pattern.permute.xlu0 0
        %1469 = vperm.xlu0 %1468, %v1294
        %v1470 = vpop.permute.xlu0 %1469
        %1471 = vset.pattern.permute.xlu0 0
        %1472 = vperm.xlu0 %1471, %v1295
        %v1473 = vpop.permute.xlu0 %1472
        %1474 = vset.pattern.permute.xlu0 0
        %1475 = vperm.xlu0 %1474, %v1296
        %v1476 = vpop.permute.xlu0 %1475
        %1477 = vset.pattern.permute.xlu0 0
        %1478 = vperm.xlu0 %1477, %v1297
        %v1479 = vpop.permute.xlu0 %1478
        %1480 = vset.pattern.permute.xlu0 0
        %1481 = vperm.xlu0 %1480, %v1298
        %v1482 = vpop.permute.xlu0 %1481
        %1483 = vset.pattern.permute.xlu0 0
        %1484 = vperm.xlu0 %1483, %v1299
        %v1485 = vpop.permute.xlu0 %1484
        %1486 = vset.pattern.permute.xlu0 0
        %1487 = vperm.xlu0 %1486, %v1300
        %v1488 = vpop.permute.xlu0 %1487
        %1489 = vset.pattern.permute.xlu0 0
        %1490 = vperm.xlu0 %1489, %v1301
        %v1491 = vpop.permute.xlu0 %1490
        %1492 = vset.pattern.permute.xlu0 0
        %1493 = vperm.xlu0 %1492, %v1302
        %v1494 = vpop.permute.xlu0 %1493
        %1495 = vset.pattern.permute.xlu0 0
        %1496 = vperm.xlu0 %1495, %v1303
        %v1497 = vpop.permute.xlu0 %1496
        %1498 = vset.pattern.permute.xlu0 0
        %1499 = vperm.xlu0 %1498, %v1304
        %v1500 = vpop.permute.xlu0 %1499
        %1501 = vset.pattern.permute.xlu0 0
        %1502 = vperm.xlu0 %1501, %v1305
        %v1503 = vpop.permute.xlu0 %1502
        %1504 = vset.pattern.permute.xlu0 0
        %1505 = vperm.xlu0 %1504, %v1306
        %v1506 = vpop.permute.xlu0 %1505
        %1507 = vset.pattern.permute.xlu0 0
        %1508 = vperm.xlu0 %1507, %v1307
        %v1509 = vpop.permute.xlu0 %1508
        %1510 = vset.pattern.permute.xlu0 0
        %1511 = vperm.xlu0 %1510, %v1308
        %v1512 = vpop.permute.xlu0 %1511
        %1513 = vset.pattern.permute.xlu0 0
        %1514 = vperm.xlu0 %1513, %v1309
        %v1515 = vpop.permute.xlu0 %1514
        %1516 = vset.pattern.permute.xlu0 0
        %1517 = vperm.xlu0 %1516, %v1310
        %v1518 = vpop.permute.xlu0 %1517
        %1519 = vset.pattern.permute.xlu0 0
        %1520 = vperm.xlu0 %1519, %v1311
        %v1521 = vpop.permute.xlu0 %1520
        %1522 = vset.pattern.permute.xlu0 0
        %1523 = vperm.xlu0 %1522, %v1312
        %v1524 = vpop.permute.xlu0 %1523
        %1525 = vset.pattern.permute.xlu0 0
        %1526 = vperm.xlu0 %1525, %v1313
        %v1527 = vpop.permute.xlu0 %1526
        %1528 = vset.pattern.permute.xlu0 0
        %1529 = vperm.xlu0 %1528, %v1314
        %v1530 = vpop.permute.xlu0 %1529
        %1531 = vset.pattern.permute.xlu0 0
        %1532 = vperm.xlu0 %1531, %v1315
        %v1533 = vpop.permute.xlu0 %1532
        %1534 = vset.pattern.permute.xlu0 0
        %1535 = vperm.xlu0 %1534, %v1316
        %v1536 = vpop.permute.xlu0 %1535
        %1537 = vset.pattern.permute.xlu0 0
        %1538 = vperm.xlu0 %1537, %v1317
        %v1539 = vpop.permute.xlu0 %1538
        %1540 = vset.pattern.permute.xlu0 0
        %1541 = vperm.xlu0 %1540, %v1318
        %v1542 = vpop.permute.xlu0 %1541
        %1543 = vset.pattern.permute.xlu0 0
        %1544 = vperm.xlu0 %1543, %v1319
        %v1545 = vpop.permute.xlu0 %1544
        %1546 = vset.pattern.permute.xlu0 0
        %1547 = vperm.xlu0 %1546, %v1320
        %v1548 = vpop.permute.xlu0 %1547
        %1549 = vset.pattern.permute.xlu0 0
        %1550 = vperm.xlu0 %1549, %v1321
        %v1551 = vpop.permute.xlu0 %1550
        %1552 = vset.pattern.permute.xlu0 0
        %1553 = vperm.xlu0 %1552, %v1322
        %v1554 = vpop.permute.xlu0 %1553
        %1555 = vset.pattern.permute.xlu0 0
        %1556 = vperm.xlu0 %1555, %v1323
        %v1557 = vpop.permute.xlu0 %1556
        %1558 = vset.pattern.permute.xlu0 0
        %1559 = vperm.xlu0 %1558, %v1324
        %v1560 = vpop.permute.xlu0 %1559
        %1561 = vset.pattern.permute.xlu0 0
        %1562 = vperm.xlu0 %1561, %v1325
        %v1563 = vpop.permute.xlu0 %1562
        %1564 = vset.pattern.permute.xlu0 0
        %1565 = vperm.xlu0 %1564, %v1326
        %v1566 = vpop.permute.xlu0 %1565
        %1567 = vset.pattern.permute.xlu0 0
        %1568 = vperm.xlu0 %1567, %v1327
        %v1569 = vpop.permute.xlu0 %1568
        %1570 = vset.pattern.permute.xlu0 0
        %1571 = vperm.xlu0 %1570, %v1328
        %v1572 = vpop.permute.xlu0 %1571
        %1573 = vset.pattern.permute.xlu0 0
        %1574 = vperm.xlu0 %1573, %v1329
        %v1575 = vpop.permute.xlu0 %1574
        %1576 = vset.pattern.permute.xlu0 0
        %1577 = vperm.xlu0 %1576, %v1330
        %v1578 = vpop.permute.xlu0 %1577
        %1579 = vset.pattern.permute.xlu0 0
        %1580 = vperm.xlu0 %1579, %v1331
        %v1581 = vpop.permute.xlu0 %1580
        %1582 = vset.pattern.permute.xlu0 0
        %1583 = vperm.xlu0 %1582, %v1332
        %v1584 = vpop.permute.xlu0 %1583
        %1585 = vset.pattern.permute.xlu0 0
        %1586 = vperm.xlu0 %1585, %v1333
        %v1587 = vpop.permute.xlu0 %1586
        %1588 = vset.pattern.permute.xlu0 0
        %1589 = vperm.xlu0 %1588, %v1334
        %v1590 = vpop.permute.xlu0 %1589
        %v1591 = vlaneseq
        %v1592 = vshrl.u32 %v1591, 7
        %v1593 = vsub.s32 %v564, %v1592
        %v1594 = vrot.slane %v1401, %v1593
        %v1595 = vlaneseq
        %v1596 = vshrl.u32 %v1595, 7
        %v1597 = vsub.s32 %v564, %v1596
        %v1598 = vrot.slane %v1404, %v1597
        %v1599 = vlaneseq
        %v1600 = vshrl.u32 %v1599, 7
        %v1601 = vsub.s32 %v564, %v1600
        %v1602 = vrot.slane %v1407, %v1601
        %v1603 = vlaneseq
        %v1604 = vshrl.u32 %v1603, 7
        %v1605 = vsub.s32 %v564, %v1604
        %v1606 = vrot.slane %v1410, %v1605
        %v1607 = vlaneseq
        %v1608 = vshrl.u32 %v1607, 7
        %v1609 = vsub.s32 %v564, %v1608
        %v1610 = vrot.slane %v1413, %v1609
        %v1611 = vlaneseq
        %v1612 = vshrl.u32 %v1611, 7
        %v1613 = vsub.s32 %v564, %v1612
        %v1614 = vrot.slane %v1416, %v1613
        %v1615 = vlaneseq
        %v1616 = vshrl.u32 %v1615, 7
        %v1617 = vsub.s32 %v564, %v1616
        %v1618 = vrot.slane %v1419, %v1617
        %v1619 = vlaneseq
        %v1620 = vshrl.u32 %v1619, 7
        %v1621 = vsub.s32 %v564, %v1620
        %v1622 = vrot.slane %v1422, %v1621
        %v1623 = vlaneseq
        %v1624 = vshrl.u32 %v1623, 7
        %v1625 = vsub.s32 %v564, %v1624
        %v1626 = vrot.slane %v1425, %v1625
        %v1627 = vlaneseq
        %v1628 = vshrl.u32 %v1627, 7
        %v1629 = vsub.s32 %v564, %v1628
        %v1630 = vrot.slane %v1428, %v1629
        %v1631 = vlaneseq
        %v1632 = vshrl.u32 %v1631, 7
        %v1633 = vsub.s32 %v564, %v1632
        %v1634 = vrot.slane %v1431, %v1633
        %v1635 = vlaneseq
        %v1636 = vshrl.u32 %v1635, 7
        %v1637 = vsub.s32 %v564, %v1636
        %v1638 = vrot.slane %v1434, %v1637
        %v1639 = vlaneseq
        %v1640 = vshrl.u32 %v1639, 7
        %v1641 = vsub.s32 %v564, %v1640
        %v1642 = vrot.slane %v1437, %v1641
        %v1643 = vlaneseq
        %v1644 = vshrl.u32 %v1643, 7
        %v1645 = vsub.s32 %v564, %v1644
        %v1646 = vrot.slane %v1440, %v1645
        %v1647 = vlaneseq
        %v1648 = vshrl.u32 %v1647, 7
        %v1649 = vsub.s32 %v564, %v1648
        %v1650 = vrot.slane %v1443, %v1649
        %v1651 = vlaneseq
        %v1652 = vshrl.u32 %v1651, 7
        %v1653 = vsub.s32 %v564, %v1652
        %v1654 = vrot.slane %v1446, %v1653
        %v1655 = vlaneseq
        %v1656 = vshrl.u32 %v1655, 7
        %v1657 = vsub.s32 %v564, %v1656
        %v1658 = vrot.slane %v1449, %v1657
        %v1659 = vlaneseq
        %v1660 = vshrl.u32 %v1659, 7
        %v1661 = vsub.s32 %v564, %v1660
        %v1662 = vrot.slane %v1452, %v1661
        %v1663 = vlaneseq
        %v1664 = vshrl.u32 %v1663, 7
        %v1665 = vsub.s32 %v564, %v1664
        %v1666 = vrot.slane %v1455, %v1665
        %v1667 = vlaneseq
        %v1668 = vshrl.u32 %v1667, 7
        %v1669 = vsub.s32 %v564, %v1668
        %v1670 = vrot.slane %v1458, %v1669
        %v1671 = vlaneseq
        %v1672 = vshrl.u32 %v1671, 7
        %v1673 = vsub.s32 %v564, %v1672
        %v1674 = vrot.slane %v1461, %v1673
        %v1675 = vlaneseq
        %v1676 = vshrl.u32 %v1675, 7
        %v1677 = vsub.s32 %v564, %v1676
        %v1678 = vrot.slane %v1464, %v1677
        %v1679 = vlaneseq
        %v1680 = vshrl.u32 %v1679, 7
        %v1681 = vsub.s32 %v564, %v1680
        %v1682 = vrot.slane %v1467, %v1681
        %v1683 = vlaneseq
        %v1684 = vshrl.u32 %v1683, 7
        %v1685 = vsub.s32 %v564, %v1684
        %v1686 = vrot.slane %v1470, %v1685
        %v1687 = vlaneseq
        %v1688 = vshrl.u32 %v1687, 7
        %v1689 = vsub.s32 %v564, %v1688
        %v1690 = vrot.slane %v1473, %v1689
        %v1691 = vlaneseq
        %v1692 = vshrl.u32 %v1691, 7
        %v1693 = vsub.s32 %v564, %v1692
        %v1694 = vrot.slane %v1476, %v1693
        %v1695 = vlaneseq
        %v1696 = vshrl.u32 %v1695, 7
        %v1697 = vsub.s32 %v564, %v1696
        %v1698 = vrot.slane %v1479, %v1697
        %v1699 = vlaneseq
        %v1700 = vshrl.u32 %v1699, 7
        %v1701 = vsub.s32 %v564, %v1700
        %v1702 = vrot.slane %v1482, %v1701
        %v1703 = vlaneseq
        %v1704 = vshrl.u32 %v1703, 7
        %v1705 = vsub.s32 %v564, %v1704
        %v1706 = vrot.slane %v1485, %v1705
        %v1707 = vlaneseq
        %v1708 = vshrl.u32 %v1707, 7
        %v1709 = vsub.s32 %v564, %v1708
        %v1710 = vrot.slane %v1488, %v1709
        %v1711 = vlaneseq
        %v1712 = vshrl.u32 %v1711, 7
        %v1713 = vsub.s32 %v564, %v1712
        %v1714 = vrot.slane %v1491, %v1713
        %v1715 = vlaneseq
        %v1716 = vshrl.u32 %v1715, 7
        %v1717 = vsub.s32 %v564, %v1716
        %v1718 = vrot.slane %v1494, %v1717
        %v1719 = vlaneseq
        %v1720 = vshrl.u32 %v1719, 7
        %v1721 = vsub.s32 %v564, %v1720
        %v1722 = vrot.slane %v1497, %v1721
        %v1723 = vlaneseq
        %v1724 = vshrl.u32 %v1723, 7
        %v1725 = vsub.s32 %v564, %v1724
        %v1726 = vrot.slane %v1500, %v1725
        %v1727 = vlaneseq
        %v1728 = vshrl.u32 %v1727, 7
        %v1729 = vsub.s32 %v564, %v1728
        %v1730 = vrot.slane %v1503, %v1729
        %v1731 = vlaneseq
        %v1732 = vshrl.u32 %v1731, 7
        %v1733 = vsub.s32 %v564, %v1732
        %v1734 = vrot.slane %v1506, %v1733
        %v1735 = vlaneseq
        %v1736 = vshrl.u32 %v1735, 7
        %v1737 = vsub.s32 %v564, %v1736
        %v1738 = vrot.slane %v1509, %v1737
        %v1739 = vlaneseq
        %v1740 = vshrl.u32 %v1739, 7
        %v1741 = vsub.s32 %v564, %v1740
        %v1742 = vrot.slane %v1512, %v1741
        %v1743 = vlaneseq
        %v1744 = vshrl.u32 %v1743, 7
        %v1745 = vsub.s32 %v564, %v1744
        %v1746 = vrot.slane %v1515, %v1745
        %v1747 = vlaneseq
        %v1748 = vshrl.u32 %v1747, 7
        %v1749 = vsub.s32 %v564, %v1748
        %v1750 = vrot.slane %v1518, %v1749
        %v1751 = vlaneseq
        %v1752 = vshrl.u32 %v1751, 7
        %v1753 = vsub.s32 %v564, %v1752
        %v1754 = vrot.slane %v1521, %v1753
        %v1755 = vlaneseq
        %v1756 = vshrl.u32 %v1755, 7
        %v1757 = vsub.s32 %v564, %v1756
        %v1758 = vrot.slane %v1524, %v1757
        %v1759 = vlaneseq
        %v1760 = vshrl.u32 %v1759, 7
        %v1761 = vsub.s32 %v564, %v1760
        %v1762 = vrot.slane %v1527, %v1761
        %v1763 = vlaneseq
        %v1764 = vshrl.u32 %v1763, 7
        %v1765 = vsub.s32 %v564, %v1764
        %v1766 = vrot.slane %v1530, %v1765
        %v1767 = vlaneseq
        %v1768 = vshrl.u32 %v1767, 7
        %v1769 = vsub.s32 %v564, %v1768
        %v1770 = vrot.slane %v1533, %v1769
        %v1771 = vlaneseq
        %v1772 = vshrl.u32 %v1771, 7
        %v1773 = vsub.s32 %v564, %v1772
        %v1774 = vrot.slane %v1536, %v1773
        %v1775 = vlaneseq
        %v1776 = vshrl.u32 %v1775, 7
        %v1777 = vsub.s32 %v564, %v1776
        %v1778 = vrot.slane %v1539, %v1777
        %v1779 = vlaneseq
        %v1780 = vshrl.u32 %v1779, 7
        %v1781 = vsub.s32 %v564, %v1780
        %v1782 = vrot.slane %v1542, %v1781
        %v1783 = vlaneseq
        %v1784 = vshrl.u32 %v1783, 7
        %v1785 = vsub.s32 %v564, %v1784
        %v1786 = vrot.slane %v1545, %v1785
        %v1787 = vlaneseq
        %v1788 = vshrl.u32 %v1787, 7
        %v1789 = vsub.s32 %v564, %v1788
        %v1790 = vrot.slane %v1548, %v1789
        %v1791 = vlaneseq
        %v1792 = vshrl.u32 %v1791, 7
        %v1793 = vsub.s32 %v564, %v1792
        %v1794 = vrot.slane %v1551, %v1793
        %v1795 = vlaneseq
        %v1796 = vshrl.u32 %v1795, 7
        %v1797 = vsub.s32 %v564, %v1796
        %v1798 = vrot.slane %v1554, %v1797
        %v1799 = vlaneseq
        %v1800 = vshrl.u32 %v1799, 7
        %v1801 = vsub.s32 %v564, %v1800
        %v1802 = vrot.slane %v1557, %v1801
        %v1803 = vlaneseq
        %v1804 = vshrl.u32 %v1803, 7
        %v1805 = vsub.s32 %v564, %v1804
        %v1806 = vrot.slane %v1560, %v1805
        %v1807 = vlaneseq
        %v1808 = vshrl.u32 %v1807, 7
        %v1809 = vsub.s32 %v564, %v1808
        %v1810 = vrot.slane %v1563, %v1809
        %v1811 = vlaneseq
        %v1812 = vshrl.u32 %v1811, 7
        %v1813 = vsub.s32 %v564, %v1812
        %v1814 = vrot.slane %v1566, %v1813
        %v1815 = vlaneseq
        %v1816 = vshrl.u32 %v1815, 7
        %v1817 = vsub.s32 %v564, %v1816
        %v1818 = vrot.slane %v1569, %v1817
        %v1819 = vlaneseq
        %v1820 = vshrl.u32 %v1819, 7
        %v1821 = vsub.s32 %v564, %v1820
        %v1822 = vrot.slane %v1572, %v1821
        %v1823 = vlaneseq
        %v1824 = vshrl.u32 %v1823, 7
        %v1825 = vsub.s32 %v564, %v1824
        %v1826 = vrot.slane %v1575, %v1825
        %v1827 = vlaneseq
        %v1828 = vshrl.u32 %v1827, 7
        %v1829 = vsub.s32 %v564, %v1828
        %v1830 = vrot.slane %v1578, %v1829
        %v1831 = vlaneseq
        %v1832 = vshrl.u32 %v1831, 7
        %v1833 = vsub.s32 %v564, %v1832
        %v1834 = vrot.slane %v1581, %v1833
        %v1835 = vlaneseq
        %v1836 = vshrl.u32 %v1835, 7
        %v1837 = vsub.s32 %v564, %v1836
        %v1838 = vrot.slane %v1584, %v1837
        %v1839 = vlaneseq
        %v1840 = vshrl.u32 %v1839, 7
        %v1841 = vsub.s32 %v564, %v1840
        %v1842 = vrot.slane %v1587, %v1841
        %v1843 = vlaneseq
        %v1844 = vshrl.u32 %v1843, 7
        %v1845 = vsub.s32 %v564, %v1844
        %v1846 = vrot.slane %v1590, %v1845
        %v1847 = vsel %vm735, %v1598, %v1594
        %v1848 = vsel %vm737, %v1602, %v1847
        %v1849 = vsel %vm739, %v1606, %v1848
        %vm1850 = vcmask 1044484
        %v1851 = vsel %vm1850, %v1610, %v1849
        %vm1852 = vcmask 1045509
        %v1853 = vsel %vm1852, %v1614, %v1851
        %vm1854 = vcmask 1046534
        %v1855 = vsel %vm1854, %v1618, %v1853
        %vm1856 = vcmask 1047559
        %v1857 = vsel %vm1856, %v1622, %v1855
        %v1858 = vsel %vm735, %v1630, %v1626
        %v1859 = vsel %vm737, %v1634, %v1858
        %v1860 = vsel %vm739, %v1638, %v1859
        %v1861 = vsel %vm1850, %v1642, %v1860
        %v1862 = vsel %vm1852, %v1646, %v1861
        %v1863 = vsel %vm1854, %v1650, %v1862
        %v1864 = vsel %vm1856, %v1654, %v1863
        %v1865 = vsel %vm735, %v1662, %v1658
        %v1866 = vsel %vm737, %v1666, %v1865
        %v1867 = vsel %vm739, %v1670, %v1866
        %v1868 = vsel %vm1850, %v1674, %v1867
        %v1869 = vsel %vm1852, %v1678, %v1868
        %v1870 = vsel %vm1854, %v1682, %v1869
        %v1871 = vsel %vm1856, %v1686, %v1870
        %v1872 = vsel %vm735, %v1694, %v1690
        %v1873 = vsel %vm737, %v1698, %v1872
        %v1874 = vsel %vm739, %v1702, %v1873
        %v1875 = vsel %vm1850, %v1706, %v1874
        %v1876 = vsel %vm1852, %v1710, %v1875
        %v1877 = vsel %vm1854, %v1714, %v1876
        %v1878 = vsel %vm1856, %v1718, %v1877
        %v1879 = vsel %vm735, %v1726, %v1722
        %v1880 = vsel %vm737, %v1730, %v1879
        %v1881 = vsel %vm739, %v1734, %v1880
        %v1882 = vsel %vm1850, %v1738, %v1881
        %v1883 = vsel %vm1852, %v1742, %v1882
        %v1884 = vsel %vm1854, %v1746, %v1883
        %v1885 = vsel %vm1856, %v1750, %v1884
        %v1886 = vsel %vm735, %v1758, %v1754
        %v1887 = vsel %vm737, %v1762, %v1886
        %v1888 = vsel %vm739, %v1766, %v1887
        %v1889 = vsel %vm1850, %v1770, %v1888
        %v1890 = vsel %vm1852, %v1774, %v1889
        %v1891 = vsel %vm1854, %v1778, %v1890
        %v1892 = vsel %vm1856, %v1782, %v1891
        %v1893 = vsel %vm735, %v1790, %v1786
        %v1894 = vsel %vm737, %v1794, %v1893
        %v1895 = vsel %vm739, %v1798, %v1894
        %v1896 = vsel %vm1850, %v1802, %v1895
        %v1897 = vsel %vm1852, %v1806, %v1896
        %v1898 = vsel %vm1854, %v1810, %v1897
        %v1899 = vsel %vm1856, %v1814, %v1898
        %v1900 = vsel %vm735, %v1822, %v1818
        %v1901 = vsel %vm737, %v1826, %v1900
        %v1902 = vsel %vm739, %v1830, %v1901
        %v1903 = vsel %vm1850, %v1834, %v1902
        %v1904 = vsel %vm1852, %v1838, %v1903
        %v1905 = vsel %vm1854, %v1842, %v1904
        %v1906 = vsel %vm1856, %v1846, %v1905
        %vm1915 = vcmask 31744
        %v1916 = vsel %vm1915, %v1857, 0.0
        %1917 = vadd.xlane.f32.xlu0 %v1916
        %v1918 = vpop.xlane.xlu0 %1917
        %v1919 = vsel %vm1915, %v1864, 0.0
        %1920 = vadd.xlane.f32.xlu0 %v1919
        %v1921 = vpop.xlane.xlu0 %1920
        %v1922 = vsel %vm1915, %v1871, 0.0
        %1923 = vadd.xlane.f32.xlu0 %v1922
        %v1924 = vpop.xlane.xlu0 %1923
        %v1925 = vsel %vm1915, %v1878, 0.0
        %1926 = vadd.xlane.f32.xlu0 %v1925
        %v1927 = vpop.xlane.xlu0 %1926
        %v1928 = vsel %vm1915, %v1885, 0.0
        %1929 = vadd.xlane.f32.xlu0 %v1928
        %v1930 = vpop.xlane.xlu0 %1929
        %v1931 = vsel %vm1915, %v1892, 0.0
        %1932 = vadd.xlane.f32.xlu0 %v1931
        %v1933 = vpop.xlane.xlu0 %1932
        %v1934 = vsel %vm1915, %v1899, 0.0
        %1935 = vadd.xlane.f32.xlu0 %v1934
        %v1936 = vpop.xlane.xlu0 %1935
        %v1937 = vsel %vm1915, %v1906, 0.0
        %1938 = vadd.xlane.f32.xlu0 %v1937
        %v1939 = vpop.xlane.xlu0 %1938
        %v1940 = vxor.u32 %v1918, 2147483648
        %v1941 = vxor.u32 %v1921, 2147483648
        %v1942 = vxor.u32 %v1924, 2147483648
        %v1943 = vxor.u32 %v1927, 2147483648
        %v1944 = vxor.u32 %v1930, 2147483648
        %v1945 = vxor.u32 %v1933, 2147483648
        %v1946 = vxor.u32 %v1936, 2147483648
        %v1947 = vxor.u32 %v1939, 2147483648
        %v1948 = vmul.f32 %v1940, 1.442695
        %v1949 = vpow.pop %v1948
        %v1950 = vmul.f32 %v1941, 1.442695
        %v1951 = vpow.pop %v1950
        %v1952 = vmul.f32 %v1942, 1.442695
        %v1953 = vpow.pop %v1952
        %v1954 = vmul.f32 %v1943, 1.442695
        %v1955 = vpow.pop %v1954
        %v1956 = vmul.f32 %v1944, 1.442695
        %v1957 = vpow.pop %v1956
        %v1958 = vmul.f32 %v1945, 1.442695
        %v1959 = vpow.pop %v1958
        %v1960 = vmul.f32 %v1946, 1.442695
        %v1961 = vpow.pop %v1960
        %v1962 = vmul.f32 %v1947, 1.442695
        %v1963 = vpow.pop %v1962
        %v1964 = vadd.f32 %v1949, 1.0
        %v1965 = vadd.f32 %v1951, 1.0
        %v1966 = vadd.f32 %v1953, 1.0
        %v1967 = vadd.f32 %v1955, 1.0
        %v1968 = vadd.f32 %v1957, 1.0
        %v1969 = vadd.f32 %v1959, 1.0
        %v1970 = vadd.f32 %v1961, 1.0
        %v1971 = vadd.f32 %v1963, 1.0
        %v1972 = vrcp.pop %v1964
        %v1973 = vmul.f32 1.0, %v1972
        %v1974 = vrcp.pop %v1965
        %v1975 = vmul.f32 1.0, %v1974
        %v1976 = vrcp.pop %v1966
        %v1977 = vmul.f32 1.0, %v1976
        %v1978 = vrcp.pop %v1967
        %v1979 = vmul.f32 1.0, %v1978
        %v1980 = vrcp.pop %v1968
        %v1981 = vmul.f32 1.0, %v1980
        %v1982 = vrcp.pop %v1969
        %v1983 = vmul.f32 1.0, %v1982
        %v1984 = vrcp.pop %v1970
        %v1985 = vmul.f32 1.0, %v1984
        %v1986 = vrcp.pop %v1971
        %v1987 = vmul.f32 1.0, %v1986
        %v1988 = vmul.f32 %v189, %v1973
        %v1989 = vmul.f32 %v190, %v1975
        %v1990 = vmul.f32 %v191, %v1977
        %v1991 = vmul.f32 %v192, %v1979
        %v1992 = vmul.f32 %v193, %v1981
        %v1993 = vmul.f32 %v194, %v1983
        %v1994 = vmul.f32 %v195, %v1985
        %v1995 = vmul.f32 %v196, %v1987
        %1996 = vst [vmem:[%s188] sm:$0xff] %v1988
        %1997 = vst [vmem:[%s188 + $0x8] sm:$0xff] %v1989
        %1998 = vst [vmem:[%s188 + $0x10] sm:$0xff] %v1990
        %1999 = vst [vmem:[%s188 + $0x18] sm:$0xff] %v1991
        %2000 = vst [vmem:[%s188 + $0x20] sm:$0xff] %v1992
        %2001 = vst [vmem:[%s188 + $0x28] sm:$0xff] %v1993
        %2002 = vst [vmem:[%s188 + $0x30] sm:$0xff] %v1994
        %2003 = vst [vmem:[%s188 + $0x38] sm:$0xff] %v1995
        %s2004 = sand.u32 %s96, 1
        %s2005 = scalar_lea.sflag [#allocation4], %s2004
        %s2006 = sand.u32 %s96, 1
        %s2007 = smul.addr %s2006, 64
        %s2008 = scalar_lea.vmem [#allocation5], %s2007
        // Predicated region
        $region37: #{tpu_custom_call.1} parent=31 // pred_check
          %p2009 = pneg %p106
        $region38: #{tpu_custom_call.1} parent=31 // pred_check_branch
          %2011 = sbr.rel (%p2009) target = $region40
        $region39: #{tpu_custom_call.1} parent=31 // pred_region
          %s2013 = ssub.s32 1024, 1024
          %2014 = vsyncadd %s2005, %s2013
          %s2015 = smul.addr %s20, 8
          %s2016 = smul.addr %s2015, 128
          %s2017 = scalar_lea.hbm %s3, %s2016
          %s2018 = sshll.u32 %s2008, 4
          %s2019 = int_to_ptr.vmem [resolvable:$true] %s2018
          %2024 = dma.vmem_to_hbm [thread:$0]  %s2019, 1024, %s2017, %s2005, 128, 128, 8
        $region40: #{tpu_custom_call.1} parent=31 // pred_fallthru
          _
      $region32: #{tpu_custom_call.1} parent=5 // pred_fallthru
        _
      %p2025 = scmp.le.s32.totalorder 2, %s15
      // Predicated region
      $region41: #{tpu_custom_call.1} parent=5 // pred_check
        %p2026 = pneg %p2025
      $region42: #{tpu_custom_call.1} parent=5 // pred_check_branch
        %2028 = sbr.rel (%p2026) target = $region44
      $region43: #{tpu_custom_call.1} parent=5 // pred_region
        %s2029 = ssub.s32 %s15, 2
        // Predicated region
        $region45: #{tpu_custom_call.1} parent=43 // pred_check
          %p2030 = pneg %p112
        $region46: #{tpu_custom_call.1} parent=43 // pred_check_branch
          %2032 = sbr.rel (%p2030) target = $region48
        $region47: #{tpu_custom_call.1} parent=43 // pred_region
          %s2033 = sand.u32 %s97, 1
          %s2034 = scalar_lea.sflag [#allocation4], %s2033
          %s2035 = sand.u32 %s97, 1
          %s2036 = smul.addr %s2035, 64
          %s2037 = scalar_lea.vmem [#allocation5], %s2036
          %2038 = dma.done %s2034, 1024
        $region48: #{tpu_custom_call.1} parent=43 // pred_fallthru
          _
      $region44: #{tpu_custom_call.1} parent=5 // pred_fallthru
        _
    $region6: #{tpu_custom_call.1} parent=1 // loop_footer
      %s19 = sadd.s32 1, %s15
    $region7: #{tpu_custom_call.1} parent=1 // loop_footer_branch
      %14 = sbr.rel target = $region3
    $region8: #{tpu_custom_call.1} parent=1 // loop_exit
      _
    %2039 = vsyncpa [#allocation3], 1
    %s2040 = scalar_lea.sflag [#allocation3], 1
    %2041 = vsyncpa %s2040, 1
    %2042 = vsyncpa [#allocation4], 1
    %s2043 = scalar_lea.sflag [#allocation4], 1
    %2044 = vsyncpa %s2043, 1

</llo_original>
